<compile_context>
chip_gen: v6e
topology: v6e:2x2x1
jax: 0.10.0
libtpu: 0.0.40
codegen_flags: <defaults>
</compile_context>

<pallas_src>
import functools

import jax
import jax.numpy as jnp
from jax.experimental import pallas as pl
from jax.experimental.pallas import tpu as pltpu


def _round_up(n, m):
    return ((n + m - 1) // m) * m


def _vae_kernel(x_ref, epsw_ref,
                w1_ref, b1_ref, w2_ref, b2_ref,
                w3s_ref, b3_ref, w4_ref, b4_ref,
                recon_ref, mulv_ref, *, latent_dim):
    # ---- encoder: Linear -> ReLU -> Linear (kept in f32; tiny dots) ----
    h = jnp.dot(x_ref[...], w1_ref[...],
                preferred_element_type=jnp.float32) + b1_ref[...]
    h = jnp.maximum(h, 0.0)
    # Single dot over the full encoder head -> merged [mu | logvar] block.
    mulv = jnp.dot(h, w2_ref[...],
                   preferred_element_type=jnp.float32) + b2_ref[...]
    mulv_ref[...] = mulv                       # one lane-dense writeback

    # ---- reparameterize without lane slicing ----
    # Build zfull = [mu | eps * exp(0.5*logvar)] with a lane mask; the mu-half
    # of epsw is zero-padded in the wrapper, and exp() on the mu lanes is
    # discarded by the select (EUP work, negligible).
    lane = jax.lax.broadcasted_iota(jnp.int32, mulv.shape, dimension=1)
    std = jnp.exp(0.5 * mulv)
    zfull = jnp.where(lane < latent_dim, mulv, epsw_ref[...] * std)

    # ---- decoder: Linear -> ReLU -> Linear -> Sigmoid (bf16 MXU, f32 acc) ----
    # w3s is [w3; w3] row-stacked, so zfull @ w3s == (mu + eps*std) @ w3.
    d = jnp.dot(zfull.astype(jnp.bfloat16), w3s_ref[...],
                preferred_element_type=jnp.float32) + b3_ref[...]
    d = jnp.maximum(d, 0.0)
    logits = jnp.dot(d.astype(jnp.bfloat16), w4_ref[...],
                     preferred_element_type=jnp.float32) + b4_ref[...]
    # sigmoid = 1 / (1 + exp(-x)): exp and reciprocal both on the EUP.
    recon = pl.reciprocal(1.0 + jnp.exp(-logits), approx=True)
    recon_ref[...] = recon.astype(recon_ref.dtype)


def vae_forward(x, params, eps, *, latent_dim, max_tile_b=1024):
    """Batch-tiled Pallas VAE forward. Weights stay VMEM-resident across tiles."""
    B, input_dim = x.shape
    w1, b1, w2, b2, w3, b3, w4, b4 = params
    hidden_dim = w1.shape[1]
    two_lat = 2 * latent_dim

    # Decoder weights to bf16 MXU operands; w3 row-stacked so the merged
    # [mu | eps*std] block feeds the decoder without any lane slicing.
    w3s = jnp.concatenate([w3, w3], axis=0).astype(jnp.bfloat16)  # (2*latent, hidden)
    w4b = w4.astype(jnp.bfloat16)

    # eps widened to 2*latent lanes (zeros under the mu half) so every tiled
    # input/output block is at least 32 lanes wide and shares the mulv layout.
    eps_wide = jnp.pad(eps, ((0, 0), (latent_dim, 0)))

    # ---- batch tiling: big tiles, few grid steps.  When the batch is large
    # enough, use exactly 2 tiles so both v7x TensorCores get work; on
    # v5e/v6e this is just a 2-step loop with well-amortized overhead. ----
    if B <= 16:
        tile_b = _round_up(max(B, 1), 16)
    else:
        tile_b = min(max_tile_b, _round_up(-(-B // 2), 16))
    num_tiles = -(-B // tile_b)
    b_pad = tile_b * num_tiles
    if b_pad != B:
        x = jnp.pad(x, ((0, b_pad - B), (0, 0)))
        eps_wide = jnp.pad(eps_wide, ((0, b_pad - B), (0, 0)))
    grid = (num_tiles,)

    def tiled(shape):       # batch-tiled, pipelined per grid step
        return pl.BlockSpec(shape, lambda i: (i, 0))

    def resident(shape):    # constant block index -> DMA'd once, stays in VMEM
        return pl.BlockSpec(shape, lambda i: (0, 0))

    in_specs = [
        tiled((tile_b, input_dim)),          # x
        tiled((tile_b, two_lat)),            # eps_wide
        resident((input_dim, hidden_dim)),   # w1  (f32)
        resident((1, hidden_dim)),           # b1
        resident((hidden_dim, two_lat)),     # w2  (f32, full head)
        resident((1, two_lat)),              # b2
        resident((two_lat, hidden_dim)),     # w3 stacked (bf16)
        resident((1, hidden_dim)),           # b3
        resident((hidden_dim, input_dim)),   # w4 (bf16)
        resident((1, input_dim)),            # b4
    ]
    out_specs = (
        tiled((tile_b, input_dim)),          # recon
        tiled((tile_b, two_lat)),            # merged [mu | logvar]
    )
    out_shapes = (
        jax.ShapeDtypeStruct((b_pad, input_dim), jnp.float32),
        jax.ShapeDtypeStruct((b_pad, two_lat), jnp.float32),
    )

    kernel = functools.partial(_vae_kernel, latent_dim=latent_dim)

    recon, mulv = pl.pallas_call(
        kernel,
        grid=grid,
        out_shape=out_shapes,
        in_specs=in_specs,
        out_specs=out_specs,
        compiler_params=pltpu.CompilerParams(
            dimension_semantics=("parallel",),
            vmem_limit_bytes=16 * 1024 * 1024,
        ),
    )(x, eps_wide, w1, b1, w2, b2, w3s, b3, w4b, b4)

    recon = recon[:B]
    mu = mulv[:B, :latent_dim]       # free slice in the wrapper
    logvar = mulv[:B, latent_dim:]
    return recon, mu, logvar


def init_params(key, input_dim, hidden_dim, latent_dim):
    """Deterministic synthetic parameters. Weights stored as [in, out]."""
    ks = jax.random.split(key, 8)
    scale = 0.1
    w1 = scale * jax.random.normal(ks[0], (input_dim, hidden_dim), jnp.float32)
    b1 = scale * jax.random.normal(ks[1], (1, hidden_dim), jnp.float32)
    w2 = scale * jax.random.normal(ks[2], (hidden_dim, 2 * latent_dim), jnp.float32)
    b2 = scale * jax.random.normal(ks[3], (1, 2 * latent_dim), jnp.float32)
    w3 = scale * jax.random.normal(ks[4], (latent_dim, hidden_dim), jnp.float32)
    b3 = scale * jax.random.normal(ks[5], (1, hidden_dim), jnp.float32)
    w4 = scale * jax.random.normal(ks[6], (hidden_dim, input_dim), jnp.float32)
    b4 = scale * jax.random.normal(ks[7], (1, input_dim), jnp.float32)
    return (w1, b1, w2, b2, w3, b3, w4, b4)


def vae_reference(x, params, eps, *, latent_dim):
    """Pure-JAX f32 reference matching the PyTorch module semantics."""
    w1, b1, w2, b2, w3, b3, w4, b4 = params
    h = jnp.maximum(x @ w1 + b1, 0.0)
    enc = h @ w2 + b2
    mu, logvar = enc[:, :latent_dim], enc[:, latent_dim:]
    z = mu + eps * jnp.exp(0.5 * logvar)
    d = jnp.maximum(z @ w3 + b3, 0.0)
    recon = jax.nn.sigmoid(d @ w4 + b4)
    return recon, mu, logvar


if __name__ == "__main__":
    # Small feature dims (as the module implies) but enough batch rows that the
    # grid has 2 large tiles (one per v7x TensorCore; a cheap 2-step loop on
    # v5e/v6e).
    B, input_dim, hidden_dim, latent_dim = 256, 64, 32, 16

    key = jax.random.PRNGKey(0)
    kx, kp, ke = jax.random.split(key, 3)

    x = jax.random.normal(kx, (B, input_dim), jnp.float32)
    params = init_params(kp, input_dim, hidden_dim, latent_dim)
    eps = jax.random.normal(ke, (B, latent_dim), jnp.float32)

    recon, mu, logvar = jax.block_until_ready(
        vae_forward(x, params, eps, latent_dim=latent_dim))

    # Decoder uses bf16 MXU operands + approx reciprocal sigmoid -> loosen the
    # recon tolerance; encoder runs in f32 so mu/logvar track the reference
    # more tightly.
    r_ref, mu_ref, lv_ref = vae_reference(x, params, eps, latent_dim=latent_dim)
    assert jnp.allclose(mu, mu_ref, atol=5e-3), "mu mismatch"
    assert jnp.allclose(logvar, lv_ref, atol=5e-3), "logvar mismatch"
    assert jnp.allclose(recon, r_ref, atol=2e-2), "recon mismatch"

    print("KERNEL_OK")
</pallas_src>

<mosaic_0001>
module attributes {stable_mosaic.version = 11 : i64} {
  func.func @_vae_kernel(%arg0: i32, %arg1: memref<128x64xf32, #tpu.memory_space<vmem>>, %arg2: memref<128x32xf32, #tpu.memory_space<vmem>>, %arg3: memref<64x32xf32, #tpu.memory_space<vmem>>, %arg4: memref<1x32xf32, #tpu.memory_space<vmem>>, %arg5: memref<32x32xf32, #tpu.memory_space<vmem>>, %arg6: memref<1x32xf32, #tpu.memory_space<vmem>>, %arg7: memref<32x32xbf16, #tpu.memory_space<vmem>>, %arg8: memref<1x32xf32, #tpu.memory_space<vmem>>, %arg9: memref<32x64xbf16, #tpu.memory_space<vmem>>, %arg10: memref<1x64xf32, #tpu.memory_space<vmem>>, %arg11: memref<128x64xf32, #tpu.memory_space<vmem>>, %arg12: memref<128x32xf32, #tpu.memory_space<vmem>>) attributes {dimension_semantics = [#tpu.dimension_semantics<parallel>], iteration_bounds = array<i64: 2>, scalar_prefetch = 0 : i64, scratch_operands = 0 : i64, tpu.core_type = #tpu.core_type<tc>, window_params = [{transform_indices = @transform_0, window_bounds = array<i64: 128, 64>}, {transform_indices = @transform_1, window_bounds = array<i64: 128, 32>}, {pipeline_mode = #tpu.pipeline_mode<synchronous>, transform_indices = @transform_2, window_bounds = array<i64: 64, 32>}, {pipeline_mode = #tpu.pipeline_mode<synchronous>, transform_indices = @transform_3, window_bounds = array<i64: 1, 32>}, {pipeline_mode = #tpu.pipeline_mode<synchronous>, transform_indices = @transform_4, window_bounds = array<i64: 32, 32>}, {pipeline_mode = #tpu.pipeline_mode<synchronous>, transform_indices = @transform_5, window_bounds = array<i64: 1, 32>}, {pipeline_mode = #tpu.pipeline_mode<synchronous>, transform_indices = @transform_6, window_bounds = array<i64: 32, 32>}, {pipeline_mode = #tpu.pipeline_mode<synchronous>, transform_indices = @transform_7, window_bounds = array<i64: 1, 32>}, {pipeline_mode = #tpu.pipeline_mode<synchronous>, transform_indices = @transform_8, window_bounds = array<i64: 32, 64>}, {pipeline_mode = #tpu.pipeline_mode<synchronous>, transform_indices = @transform_9, window_bounds = array<i64: 1, 64>}, {transform_indices = @transform_10, window_bounds = array<i64: 128, 64>}, {transform_indices = @transform_11, window_bounds = array<i64: 128, 32>}]} {
    %c0 = arith.constant 0 : index
    %c0_0 = arith.constant 0 : index
    %0 = vector.load %arg1[%c0, %c0_0] : memref<128x64xf32, #tpu.memory_space<vmem>>, vector<128x64xf32>
    %c0_1 = arith.constant 0 : index
    %c0_2 = arith.constant 0 : index
    %1 = vector.load %arg3[%c0_1, %c0_2] : memref<64x32xf32, #tpu.memory_space<vmem>>, vector<64x32xf32>
    %cst = arith.constant dense<0.000000e+00> : vector<128x32xf32>
    %2 = tpu.matmul %0, %1, %cst {dimension_numbers = #tpu.dot_dimension_numbers<[1], [0], [0], [1], [0, 0, 1, 1], [], []>} : vector<128x64xf32>, vector<64x32xf32>, vector<128x32xf32> -> vector<128x32xf32>
    %c0_3 = arith.constant 0 : index
    %c0_4 = arith.constant 0 : index
    %3 = vector.load %arg4[%c0_3, %c0_4] : memref<1x32xf32, #tpu.memory_space<vmem>>, vector<1x32xf32>
    %4 = vector.broadcast %3 : vector<1x32xf32> to vector<128x32xf32>
    %5 = arith.addf %2, %4 : vector<128x32xf32>
    %cst_5 = arith.constant 0.000000e+00 : f32
    %6 = vector.broadcast %cst_5 : f32 to vector<128x32xf32>
    %7 = arith.maximumf %5, %6 : vector<128x32xf32>
    %c0_6 = arith.constant 0 : index
    %c0_7 = arith.constant 0 : index
    %8 = vector.load %arg5[%c0_6, %c0_7] : memref<32x32xf32, #tpu.memory_space<vmem>>, vector<32x32xf32>
    %cst_8 = arith.constant dense<0.000000e+00> : vector<128x32xf32>
    %9 = tpu.matmul %7, %8, %cst_8 {dimension_numbers = #tpu.dot_dimension_numbers<[1], [0], [0], [1], [0, 0, 1, 1], [], []>} : vector<128x32xf32>, vector<32x32xf32>, vector<128x32xf32> -> vector<128x32xf32>
    %c0_9 = arith.constant 0 : index
    %c0_10 = arith.constant 0 : index
    %10 = vector.load %arg6[%c0_9, %c0_10] : memref<1x32xf32, #tpu.memory_space<vmem>>, vector<1x32xf32>
    %11 = vector.broadcast %10 : vector<1x32xf32> to vector<128x32xf32>
    %12 = arith.addf %9, %11 : vector<128x32xf32>
    %c0_11 = arith.constant 0 : index
    %c0_12 = arith.constant 0 : index
    %13 = vector.load %arg12[%c0_11, %c0_12] : memref<128x32xf32, #tpu.memory_space<vmem>>, vector<128x32xf32>
    tpu.vector_store %arg12[%c0_11, %c0_12], %12 {strides = array<i32>} : memref<128x32xf32, #tpu.memory_space<vmem>>, vector<128x32xf32>,
    %14 = tpu.iota {dimensions = array<i32: 1>} : vector<128x32xi32>
    %cst_13 = arith.constant 5.000000e-01 : f32
    %15 = vector.broadcast %cst_13 : f32 to vector<128x32xf32>
    %16 = arith.mulf %15, %12 : vector<128x32xf32>
    %17 = math.exp %16 : vector<128x32xf32>
    %c16_i32 = arith.constant 16 : i32
    %18 = vector.broadcast %c16_i32 : i32 to vector<128x32xi32>
    %19 = arith.cmpi slt, %14, %18 : vector<128x32xi32>
    %c0_14 = arith.constant 0 : index
    %c0_15 = arith.constant 0 : index
    %20 = vector.load %arg2[%c0_14, %c0_15] : memref<128x32xf32, #tpu.memory_space<vmem>>, vector<128x32xf32>
    %21 = arith.mulf %20, %17 : vector<128x32xf32>
    %22 = arith.select %19, %12, %21 : vector<128x32xi1>, vector<128x32xf32>
    %23 = arith.truncf %22 : vector<128x32xf32> to vector<128x32xbf16>
    %c0_16 = arith.constant 0 : index
    %c0_17 = arith.constant 0 : index
    %24 = vector.load %arg7[%c0_16, %c0_17] : memref<32x32xbf16, #tpu.memory_space<vmem>>, vector<32x32xbf16>
    %cst_18 = arith.constant dense<0.000000e+00> : vector<128x32xf32>
    %25 = tpu.matmul %23, %24, %cst_18 {dimension_numbers = #tpu.dot_dimension_numbers<[1], [0], [0], [1], [0, 0, 1, 1], [], []>} : vector<128x32xbf16>, vector<32x32xbf16>, vector<128x32xf32> -> vector<128x32xf32>
    %c0_19 = arith.constant 0 : index
    %c0_20 = arith.constant 0 : index
    %26 = vector.load %arg8[%c0_19, %c0_20] : memref<1x32xf32, #tpu.memory_space<vmem>>, vector<1x32xf32>
    %27 = vector.broadcast %26 : vector<1x32xf32> to vector<128x32xf32>
    %28 = arith.addf %25, %27 : vector<128x32xf32>
    %cst_21 = arith.constant 0.000000e+00 : f32
    %29 = vector.broadcast %cst_21 : f32 to vector<128x32xf32>
    %30 = arith.maximumf %28, %29 : vector<128x32xf32>
    %31 = arith.truncf %30 : vector<128x32xf32> to vector<128x32xbf16>
    %c0_22 = arith.constant 0 : index
    %c0_23 = arith.constant 0 : index
    %32 = vector.load %arg9[%c0_22, %c0_23] : memref<32x64xbf16, #tpu.memory_space<vmem>>, vector<32x64xbf16>
    %cst_24 = arith.constant dense<0.000000e+00> : vector<128x64xf32>
    %33 = tpu.matmul %31, %32, %cst_24 {dimension_numbers = #tpu.dot_dimension_numbers<[1], [0], [0], [1], [0, 0, 1, 1], [], []>} : vector<128x32xbf16>, vector<32x64xbf16>, vector<128x64xf32> -> vector<128x64xf32>
    %c0_25 = arith.constant 0 : index
    %c0_26 = arith.constant 0 : index
    %34 = vector.load %arg10[%c0_25, %c0_26] : memref<1x64xf32, #tpu.memory_space<vmem>>, vector<1x64xf32>
    %35 = vector.broadcast %34 : vector<1x64xf32> to vector<128x64xf32>
    %36 = arith.addf %33, %35 : vector<128x64xf32>
    %cst_27 = arith.constant 0.000000e+00 : f32
    %37 = vector.broadcast %cst_27 : f32 to vector<128x64xf32>
    %38 = arith.subf %37, %36 : vector<128x64xf32>
    %39 = math.exp %38 : vector<128x64xf32>
    %cst_28 = arith.constant 1.000000e+00 : f32
    %40 = vector.broadcast %cst_28 : f32 to vector<128x64xf32>
    %41 = arith.addf %40, %39 : vector<128x64xf32>
    %42 = tpu.reciprocal %41 {approx = true} : vector<128x64xf32> -> vector<128x64xf32>
    %c0_29 = arith.constant 0 : index
    %c0_30 = arith.constant 0 : index
    %43 = vector.load %arg11[%c0_29, %c0_30] : memref<128x64xf32, #tpu.memory_space<vmem>>, vector<128x64xf32>
    tpu.vector_store %arg11[%c0_29, %c0_30], %42 {strides = array<i32>} : memref<128x64xf32, #tpu.memory_space<vmem>>, vector<128x64xf32>,
    return
  }
  func.func @transform_0(%arg0: i32) -> (i32, i32) {
    %c0_i32 = arith.constant 0 : i32
    %c0_i32_0 = arith.constant 0 : i32
    return %arg0, %c0_i32 : i32, i32
  }
  func.func @transform_1(%arg0: i32) -> (i32, i32) {
    %c0_i32 = arith.constant 0 : i32
    %c0_i32_0 = arith.constant 0 : i32
    return %arg0, %c0_i32 : i32, i32
  }
  func.func @transform_2(%arg0: i32) -> (i32, i32) {
    %c0_i32 = arith.constant 0 : i32
    %c0_i32_0 = arith.constant 0 : i32
    %c0_i32_1 = arith.constant 0 : i32
    return %c0_i32, %c0_i32_0 : i32, i32
  }
  func.func @transform_3(%arg0: i32) -> (i32, i32) {
    %c0_i32 = arith.constant 0 : i32
    %c0_i32_0 = arith.constant 0 : i32
    %c0_i32_1 = arith.constant 0 : i32
    return %c0_i32, %c0_i32_0 : i32, i32
  }
  func.func @transform_4(%arg0: i32) -> (i32, i32) {
    %c0_i32 = arith.constant 0 : i32
    %c0_i32_0 = arith.constant 0 : i32
    %c0_i32_1 = arith.constant 0 : i32
    return %c0_i32, %c0_i32_0 : i32, i32
  }
  func.func @transform_5(%arg0: i32) -> (i32, i32) {
    %c0_i32 = arith.constant 0 : i32
    %c0_i32_0 = arith.constant 0 : i32
    %c0_i32_1 = arith.constant 0 : i32
    return %c0_i32, %c0_i32_0 : i32, i32
  }
  func.func @transform_6(%arg0: i32) -> (i32, i32) {
    %c0_i32 = arith.constant 0 : i32
    %c0_i32_0 = arith.constant 0 : i32
    %c0_i32_1 = arith.constant 0 : i32
    return %c0_i32, %c0_i32_0 : i32, i32
  }
  func.func @transform_7(%arg0: i32) -> (i32, i32) {
    %c0_i32 = arith.constant 0 : i32
    %c0_i32_0 = arith.constant 0 : i32
    %c0_i32_1 = arith.constant 0 : i32
    return %c0_i32, %c0_i32_0 : i32, i32
  }
  func.func @transform_8(%arg0: i32) -> (i32, i32) {
    %c0_i32 = arith.constant 0 : i32
    %c0_i32_0 = arith.constant 0 : i32
    %c0_i32_1 = arith.constant 0 : i32
    return %c0_i32, %c0_i32_0 : i32, i32
  }
  func.func @transform_9(%arg0: i32) -> (i32, i32) {
    %c0_i32 = arith.constant 0 : i32
    %c0_i32_0 = arith.constant 0 : i32
    %c0_i32_1 = arith.constant 0 : i32
    return %c0_i32, %c0_i32_0 : i32, i32
  }
  func.func @transform_10(%arg0: i32) -> (i32, i32) {
    %c0_i32 = arith.constant 0 : i32
    %c0_i32_0 = arith.constant 0 : i32
    return %arg0, %c0_i32 : i32, i32
  }
  func.func @transform_11(%arg0: i32) -> (i32, i32) {
    %c0_i32 = arith.constant 0 : i32
    %c0_i32_0 = arith.constant 0 : i32
    return %arg0, %c0_i32 : i32, i32
  }
}

</mosaic_0001>

<llo_original>
// kernel: tpu_custom_call.1
$region0: #{tpu_custom_call.1}
  #allocation0 [shape = 'u32[]', space=smem, size = 0x4, offset = 0x4, fixed_abs, tag = 'smem constant byte address 0x4 - core index']
  #allocation1 [shape = 'u32[144,128]{1,0:T(1,128)}', space=vmem, size = 0x12000, scoped, tag = 'internal scratch']
  %s0 = inlined_call_operand.vmem [shape: f32[256,64], index: 0, kind: input, shape index: {}]
  %s1 = inlined_call_operand.vmem [shape: f32[256,32], index: 1, kind: input, shape index: {}]
  %s2 = inlined_call_operand.vmem [shape: f32[64,32], index: 2, kind: input, shape index: {}]
  %s3 = inlined_call_operand.vmem [shape: f32[1,32], index: 3, kind: input, shape index: {}]
  %s4 = inlined_call_operand.vmem [shape: f32[32,32], index: 4, kind: input, shape index: {}]
  %s5 = inlined_call_operand.vmem [shape: f32[1,32], index: 5, kind: input, shape index: {}]
  %s6 = inlined_call_operand.vmem [shape: bf16[32,32], index: 6, kind: input, shape index: {}]
  %s7 = inlined_call_operand.vmem [shape: f32[1,32], index: 7, kind: input, shape index: {}]
  %s8 = inlined_call_operand.vmem [shape: bf16[32,64], index: 8, kind: input, shape index: {}]
  %s9 = inlined_call_operand.vmem [shape: f32[1,64], index: 9, kind: input, shape index: {}]
  %s10 = inlined_call_operand.vmem [shape: f32[256,64], index: 10, kind: output, shape index: {0}]
  %s11 = inlined_call_operand.vmem [shape: f32[256,32], index: 11, kind: output, shape index: {1}]
  %12 = xla_tuple %s10, %s11
  %s13 = sld [smem:[#allocation0]]
  $region81: #{tpu_custom_call.1} parent=0
    _
  %s15 = ssub.s32 1, %s13
  %s16 = scalar_select 0, %s15, %s13
  loop: start=0, step=1, limit=4
  $region2: #{tpu_custom_call.1} parent=0 // loop_pre_header
    _
  $region3: #{tpu_custom_call.1} parent=0 // loop_header
    %s18 = sphi 0, %s22
    %p19 = scmp.ge.s32.totalorder %s18, 4
    %s28 = sphi 0, %s30
    %s31 = sphi 0, %s28
    %s32 = sphi 0, %s31
    %s48 = sphi 0, %s32
    %s54 = sphi 0, %s56
    %s57 = sphi 0, %s54
    %s58 = sphi 0, %s57
    %s74 = sphi 0, %s58
    %s78 = sphi 0, %s78
    %s80 = sphi 0, %s78
    %s81 = sphi 0, %s80
    %s95 = sphi 0, %s81
    %s99 = sphi 0, %s99
    %s101 = sphi 0, %s99
    %s102 = sphi 0, %s101
    %s116 = sphi 0, %s102
    %s120 = sphi 0, %s120
    %s122 = sphi 0, %s120
    %s123 = sphi 0, %s122
    %s137 = sphi 0, %s123
    %s141 = sphi 0, %s141
    %s143 = sphi 0, %s141
    %s144 = sphi 0, %s143
    %s158 = sphi 0, %s144
    %s162 = sphi 0, %s162
    %s164 = sphi 0, %s162
    %s165 = sphi 0, %s164
    %s179 = sphi 0, %s165
    %s183 = sphi 0, %s183
    %s185 = sphi 0, %s183
    %s186 = sphi 0, %s185
    %s200 = sphi 0, %s186
    %s204 = sphi 0, %s204
    %s206 = sphi 0, %s204
    %s207 = sphi 0, %s206
    %s221 = sphi 0, %s207
    %s225 = sphi 0, %s225
    %s227 = sphi 0, %s225
    %s228 = sphi 0, %s227
    %s242 = sphi 0, %s228
    %s248 = sphi 0, %s250
    %s251 = sphi 0, %s248
    %s252 = sphi 0, %s251
    %s268 = sphi 0, %s252
    %s274 = sphi 0, %s276
    %s277 = sphi 0, %s274
    %s278 = sphi 0, %s277
    %s294 = sphi 0, %s278
  $region4: #{tpu_custom_call.1} parent=0 // loop_header_branch
    %21 = sbr.rel (%p19) target = $region8
  $region5: #{tpu_custom_call.1} parent=0 // loop_body
    %s23 = ssub.s32 %s18, 1
    %s24 = ssub.s32 %s18, 2
    %s25 = sadd.s32 %s18, 1
    %s26 = ssub.s32 %s18, %s25
    %p27 = scmp.eq.s32.totalorder %s26, 0
    %s29 = sadd.s32 %s28, 1
    %s30 = scalar_select %p27, %s28, %s29
    %p33 = pneg %p27
    %p34 = scmp.eq.s32.totalorder %s18, 1
    %p35 = por %p33, %p34
    %p36 = scmp.ne.s32.totalorder %s28, %s31
    %p37 = scmp.eq.s32.totalorder %s18, 0
    %p38 = por %p36, %p37
    %p39 = scmp.ne.s32.totalorder %s28, %s31
    %p40 = scmp.eq.s32.totalorder %s23, 1
    %p41 = por %p39, %p40
    %p42 = scmp.ne.s32.totalorder %s31, %s32
    %p43 = scmp.eq.s32.totalorder %s23, 0
    %p44 = por %p42, %p43
    %p45 = scmp.ne.s32.totalorder %s31, %s32
    %p46 = scmp.eq.s32.totalorder %s24, 1
    %p47 = por %p45, %p46
    %p49 = scmp.ne.s32.totalorder %s32, %s48
    %p50 = scmp.eq.s32.totalorder %s24, 0
    %p51 = por %p49, %p50
    %s52 = ssub.s32 %s18, %s25
    %p53 = scmp.eq.s32.totalorder %s52, 0
    %s55 = sadd.s32 %s54, 1
    %s56 = scalar_select %p53, %s54, %s55
    %p59 = pneg %p53
    %p60 = scmp.eq.s32.totalorder %s18, 1
    %p61 = por %p59, %p60
    %p62 = scmp.ne.s32.totalorder %s54, %s57
    %p63 = scmp.eq.s32.totalorder %s18, 0
    %p64 = por %p62, %p63
    %p65 = scmp.ne.s32.totalorder %s54, %s57
    %p66 = scmp.eq.s32.totalorder %s23, 1
    %p67 = por %p65, %p66
    %p68 = scmp.ne.s32.totalorder %s57, %s58
    %p69 = scmp.eq.s32.totalorder %s23, 0
    %p70 = por %p68, %p69
    %p71 = scmp.ne.s32.totalorder %s57, %s58
    %p72 = scmp.eq.s32.totalorder %s24, 1
    %p73 = por %p71, %p72
    %p75 = scmp.ne.s32.totalorder %s58, %s74
    %p76 = scmp.eq.s32.totalorder %s24, 0
    %p77 = por %p75, %p76
    %s79 = sadd.s32 %s78, 1
    %p82 = scmp.eq.s32.totalorder %s18, 1
    %p83 = scmp.ne.s32.totalorder %s78, %s80
    %p84 = scmp.eq.s32.totalorder %s18, 0
    %p85 = por %p83, %p84
    %p86 = scmp.ne.s32.totalorder %s78, %s80
    %p87 = scmp.eq.s32.totalorder %s23, 1
    %p88 = por %p86, %p87
    %p89 = scmp.ne.s32.totalorder %s80, %s81
    %p90 = scmp.eq.s32.totalorder %s23, 0
    %p91 = por %p89, %p90
    %p92 = scmp.ne.s32.totalorder %s80, %s81
    %p93 = scmp.eq.s32.totalorder %s24, 1
    %p94 = por %p92, %p93
    %p96 = scmp.ne.s32.totalorder %s81, %s95
    %p97 = scmp.eq.s32.totalorder %s24, 0
    %p98 = por %p96, %p97
    %s100 = sadd.s32 %s99, 1
    %p103 = scmp.eq.s32.totalorder %s18, 1
    %p104 = scmp.ne.s32.totalorder %s99, %s101
    %p105 = scmp.eq.s32.totalorder %s18, 0
    %p106 = por %p104, %p105
    %p107 = scmp.ne.s32.totalorder %s99, %s101
    %p108 = scmp.eq.s32.totalorder %s23, 1
    %p109 = por %p107, %p108
    %p110 = scmp.ne.s32.totalorder %s101, %s102
    %p111 = scmp.eq.s32.totalorder %s23, 0
    %p112 = por %p110, %p111
    %p113 = scmp.ne.s32.totalorder %s101, %s102
    %p114 = scmp.eq.s32.totalorder %s24, 1
    %p115 = por %p113, %p114
    %p117 = scmp.ne.s32.totalorder %s102, %s116
    %p118 = scmp.eq.s32.totalorder %s24, 0
    %p119 = por %p117, %p118
    %s121 = sadd.s32 %s120, 1
    %p124 = scmp.eq.s32.totalorder %s18, 1
    %p125 = scmp.ne.s32.totalorder %s120, %s122
    %p126 = scmp.eq.s32.totalorder %s18, 0
    %p127 = por %p125, %p126
    %p128 = scmp.ne.s32.totalorder %s120, %s122
    %p129 = scmp.eq.s32.totalorder %s23, 1
    %p130 = por %p128, %p129
    %p131 = scmp.ne.s32.totalorder %s122, %s123
    %p132 = scmp.eq.s32.totalorder %s23, 0
    %p133 = por %p131, %p132
    %p134 = scmp.ne.s32.totalorder %s122, %s123
    %p135 = scmp.eq.s32.totalorder %s24, 1
    %p136 = por %p134, %p135
    %p138 = scmp.ne.s32.totalorder %s123, %s137
    %p139 = scmp.eq.s32.totalorder %s24, 0
    %p140 = por %p138, %p139
    %s142 = sadd.s32 %s141, 1
    %p145 = scmp.eq.s32.totalorder %s18, 1
    %p146 = scmp.ne.s32.totalorder %s141, %s143
    %p147 = scmp.eq.s32.totalorder %s18, 0
    %p148 = por %p146, %p147
    %p149 = scmp.ne.s32.totalorder %s141, %s143
    %p150 = scmp.eq.s32.totalorder %s23, 1
    %p151 = por %p149, %p150
    %p152 = scmp.ne.s32.totalorder %s143, %s144
    %p153 = scmp.eq.s32.totalorder %s23, 0
    %p154 = por %p152, %p153
    %p155 = scmp.ne.s32.totalorder %s143, %s144
    %p156 = scmp.eq.s32.totalorder %s24, 1
    %p157 = por %p155, %p156
    %p159 = scmp.ne.s32.totalorder %s144, %s158
    %p160 = scmp.eq.s32.totalorder %s24, 0
    %p161 = por %p159, %p160
    %s163 = sadd.s32 %s162, 1
    %p166 = scmp.eq.s32.totalorder %s18, 1
    %p167 = scmp.ne.s32.totalorder %s162, %s164
    %p168 = scmp.eq.s32.totalorder %s18, 0
    %p169 = por %p167, %p168
    %p170 = scmp.ne.s32.totalorder %s162, %s164
    %p171 = scmp.eq.s32.totalorder %s23, 1
    %p172 = por %p170, %p171
    %p173 = scmp.ne.s32.totalorder %s164, %s165
    %p174 = scmp.eq.s32.totalorder %s23, 0
    %p175 = por %p173, %p174
    %p176 = scmp.ne.s32.totalorder %s164, %s165
    %p177 = scmp.eq.s32.totalorder %s24, 1
    %p178 = por %p176, %p177
    %p180 = scmp.ne.s32.totalorder %s165, %s179
    %p181 = scmp.eq.s32.totalorder %s24, 0
    %p182 = por %p180, %p181
    %s184 = sadd.s32 %s183, 1
    %p187 = scmp.eq.s32.totalorder %s18, 1
    %p188 = scmp.ne.s32.totalorder %s183, %s185
    %p189 = scmp.eq.s32.totalorder %s18, 0
    %p190 = por %p188, %p189
    %p191 = scmp.ne.s32.totalorder %s183, %s185
    %p192 = scmp.eq.s32.totalorder %s23, 1
    %p193 = por %p191, %p192
    %p194 = scmp.ne.s32.totalorder %s185, %s186
    %p195 = scmp.eq.s32.totalorder %s23, 0
    %p196 = por %p194, %p195
    %p197 = scmp.ne.s32.totalorder %s185, %s186
    %p198 = scmp.eq.s32.totalorder %s24, 1
    %p199 = por %p197, %p198
    %p201 = scmp.ne.s32.totalorder %s186, %s200
    %p202 = scmp.eq.s32.totalorder %s24, 0
    %p203 = por %p201, %p202
    %s205 = sadd.s32 %s204, 1
    %p208 = scmp.eq.s32.totalorder %s18, 1
    %p209 = scmp.ne.s32.totalorder %s204, %s206
    %p210 = scmp.eq.s32.totalorder %s18, 0
    %p211 = por %p209, %p210
    %p212 = scmp.ne.s32.totalorder %s204, %s206
    %p213 = scmp.eq.s32.totalorder %s23, 1
    %p214 = por %p212, %p213
    %p215 = scmp.ne.s32.totalorder %s206, %s207
    %p216 = scmp.eq.s32.totalorder %s23, 0
    %p217 = por %p215, %p216
    %p218 = scmp.ne.s32.totalorder %s206, %s207
    %p219 = scmp.eq.s32.totalorder %s24, 1
    %p220 = por %p218, %p219
    %p222 = scmp.ne.s32.totalorder %s207, %s221
    %p223 = scmp.eq.s32.totalorder %s24, 0
    %p224 = por %p222, %p223
    %s226 = sadd.s32 %s225, 1
    %p229 = scmp.eq.s32.totalorder %s18, 1
    %p230 = scmp.ne.s32.totalorder %s225, %s227
    %p231 = scmp.eq.s32.totalorder %s18, 0
    %p232 = por %p230, %p231
    %p233 = scmp.ne.s32.totalorder %s225, %s227
    %p234 = scmp.eq.s32.totalorder %s23, 1
    %p235 = por %p233, %p234
    %p236 = scmp.ne.s32.totalorder %s227, %s228
    %p237 = scmp.eq.s32.totalorder %s23, 0
    %p238 = por %p236, %p237
    %p239 = scmp.ne.s32.totalorder %s227, %s228
    %p240 = scmp.eq.s32.totalorder %s24, 1
    %p241 = por %p239, %p240
    %p243 = scmp.ne.s32.totalorder %s228, %s242
    %p244 = scmp.eq.s32.totalorder %s24, 0
    %p245 = por %p243, %p244
    %s246 = ssub.s32 %s18, %s25
    %p247 = scmp.eq.s32.totalorder %s246, 0
    %s249 = sadd.s32 %s248, 1
    %s250 = scalar_select %p247, %s248, %s249
    %p253 = pneg %p247
    %p254 = scmp.eq.s32.totalorder %s18, 1
    %p255 = por %p253, %p254
    %p256 = scmp.ne.s32.totalorder %s248, %s251
    %p257 = scmp.eq.s32.totalorder %s18, 0
    %p258 = por %p256, %p257
    %p259 = scmp.ne.s32.totalorder %s248, %s251
    %p260 = scmp.eq.s32.totalorder %s23, 1
    %p261 = por %p259, %p260
    %p262 = scmp.ne.s32.totalorder %s251, %s252
    %p263 = scmp.eq.s32.totalorder %s23, 0
    %p264 = por %p262, %p263
    %p265 = scmp.ne.s32.totalorder %s251, %s252
    %p266 = scmp.eq.s32.totalorder %s24, 1
    %p267 = por %p265, %p266
    %p269 = scmp.ne.s32.totalorder %s252, %s268
    %p270 = scmp.eq.s32.totalorder %s24, 0
    %p271 = por %p269, %p270
    %s272 = ssub.s32 %s18, %s25
    %p273 = scmp.eq.s32.totalorder %s272, 0
    %s275 = sadd.s32 %s274, 1
    %s276 = scalar_select %p273, %s274, %s275
    %p279 = pneg %p273
    %p280 = scmp.eq.s32.totalorder %s18, 1
    %p281 = por %p279, %p280
    %p282 = scmp.ne.s32.totalorder %s274, %s277
    %p283 = scmp.eq.s32.totalorder %s18, 0
    %p284 = por %p282, %p283
    %p285 = scmp.ne.s32.totalorder %s274, %s277
    %p286 = scmp.eq.s32.totalorder %s23, 1
    %p287 = por %p285, %p286
    %p288 = scmp.ne.s32.totalorder %s277, %s278
    %p289 = scmp.eq.s32.totalorder %s23, 0
    %p290 = por %p288, %p289
    %p291 = scmp.ne.s32.totalorder %s277, %s278
    %p292 = scmp.eq.s32.totalorder %s24, 1
    %p293 = por %p291, %p292
    %p295 = scmp.ne.s32.totalorder %s278, %s294
    %p296 = scmp.eq.s32.totalorder %s24, 0
    %p297 = por %p295, %p296
    %p298 = scmp.le.s32.totalorder 1, %s18
    %p299 = scmp.lt.s32.totalorder %s18, 3
    %p300 = pnand %p298, %p299
    %p301 = pneg %p300
    // Predicated region
    $region9: #{tpu_custom_call.1} parent=5 // pred_check
      _
    $region10: #{tpu_custom_call.1} parent=5 // pred_check_branch
      %303 = sbr.rel (%p300) target = $region12
    $region11: #{tpu_custom_call.1} parent=5 // pred_region
      %s304 = ssub.s32 %s18, 1
      // Predicated region
      $region13: #{tpu_custom_call.1} parent=11 // pred_check
        %p305 = pneg %p91
      $region14: #{tpu_custom_call.1} parent=11 // pred_check_branch
        %307 = sbr.rel (%p305) target = $region16
      $region15: #{tpu_custom_call.1} parent=11 // pred_region
        _
      $region16: #{tpu_custom_call.1} parent=11 // pred_fallthru
        _
      // Predicated region
      $region17: #{tpu_custom_call.1} parent=11 // pred_check
        %p308 = pneg %p112
      $region18: #{tpu_custom_call.1} parent=11 // pred_check_branch
        %310 = sbr.rel (%p308) target = $region20
      $region19: #{tpu_custom_call.1} parent=11 // pred_region
        _
      $region20: #{tpu_custom_call.1} parent=11 // pred_fallthru
        _
      // Predicated region
      $region21: #{tpu_custom_call.1} parent=11 // pred_check
        %p311 = pneg %p133
      $region22: #{tpu_custom_call.1} parent=11 // pred_check_branch
        %313 = sbr.rel (%p311) target = $region24
      $region23: #{tpu_custom_call.1} parent=11 // pred_region
        _
      $region24: #{tpu_custom_call.1} parent=11 // pred_fallthru
        _
      // Predicated region
      $region25: #{tpu_custom_call.1} parent=11 // pred_check
        %p314 = pneg %p154
      $region26: #{tpu_custom_call.1} parent=11 // pred_check_branch
        %316 = sbr.rel (%p314) target = $region28
      $region27: #{tpu_custom_call.1} parent=11 // pred_region
        _
      $region28: #{tpu_custom_call.1} parent=11 // pred_fallthru
        _
      // Predicated region
      $region29: #{tpu_custom_call.1} parent=11 // pred_check
        %p317 = pneg %p175
      $region30: #{tpu_custom_call.1} parent=11 // pred_check_branch
        %319 = sbr.rel (%p317) target = $region32
      $region31: #{tpu_custom_call.1} parent=11 // pred_region
        _
      $region32: #{tpu_custom_call.1} parent=11 // pred_fallthru
        _
      // Predicated region
      $region33: #{tpu_custom_call.1} parent=11 // pred_check
        %p320 = pneg %p196
      $region34: #{tpu_custom_call.1} parent=11 // pred_check_branch
        %322 = sbr.rel (%p320) target = $region36
      $region35: #{tpu_custom_call.1} parent=11 // pred_region
        _
      $region36: #{tpu_custom_call.1} parent=11 // pred_fallthru
        _
      // Predicated region
      $region37: #{tpu_custom_call.1} parent=11 // pred_check
        %p323 = pneg %p217
      $region38: #{tpu_custom_call.1} parent=11 // pred_check_branch
        %325 = sbr.rel (%p323) target = $region40
      $region39: #{tpu_custom_call.1} parent=11 // pred_region
        _
      $region40: #{tpu_custom_call.1} parent=11 // pred_fallthru
        _
      // Predicated region
      $region41: #{tpu_custom_call.1} parent=11 // pred_check
        %p326 = pneg %p238
      $region42: #{tpu_custom_call.1} parent=11 // pred_check_branch
        %328 = sbr.rel (%p326) target = $region44
      $region43: #{tpu_custom_call.1} parent=11 // pred_region
        _
      $region44: #{tpu_custom_call.1} parent=11 // pred_fallthru
        _
    $region12: #{tpu_custom_call.1} parent=5 // pred_fallthru
      _
    %p329 = scmp.lt.s32.totalorder %s18, 2
    // Predicated region
    $region45: #{tpu_custom_call.1} parent=5 // pred_check
      %p330 = pneg %p329
    $region46: #{tpu_custom_call.1} parent=5 // pred_check_branch
      %332 = sbr.rel (%p330) target = $region48
    $region47: #{tpu_custom_call.1} parent=5 // pred_region
      // Predicated region
      $region49: #{tpu_custom_call.1} parent=47 // pred_check
        %p333 = pneg %p38
      $region50: #{tpu_custom_call.1} parent=47 // pred_check_branch
        %335 = sbr.rel (%p333) target = $region52
      $region51: #{tpu_custom_call.1} parent=47 // pred_region
        %s336 = smul.u32 16, %s18
        %p337 = scmp.lt.s32.totalorder %s336, 31
        %s338 = scalar_select %p337, %s336, 31
        %s339 = smul.addr %s338, 8
        %s340 = scalar_lea.vmem %s0, %s339
        %s341 = smul.u32 16, %s18
      $region52: #{tpu_custom_call.1} parent=47 // pred_fallthru
        _
      // Predicated region
      $region53: #{tpu_custom_call.1} parent=47 // pred_check
        %p342 = pneg %p64
      $region54: #{tpu_custom_call.1} parent=47 // pred_check_branch
        %344 = sbr.rel (%p342) target = $region56
      $region55: #{tpu_custom_call.1} parent=47 // pred_region
        %s345 = smul.u32 16, %s18
        %p346 = scmp.lt.s32.totalorder %s345, 31
        %s347 = scalar_select %p346, %s345, 31
        %s348 = smul.addr %s347, 8
        %s349 = scalar_lea.vmem %s1, %s348
        %s350 = smul.u32 16, %s18
      $region56: #{tpu_custom_call.1} parent=47 // pred_fallthru
        _
    $region48: #{tpu_custom_call.1} parent=5 // pred_fallthru
      _
    %p351 = scmp.le.s32.totalorder 1, %s18
    %p352 = scmp.lt.s32.totalorder %s18, 3
    %p353 = pnand %p351, %p352
    %p354 = pneg %p353
    // Predicated region
    $region57: #{tpu_custom_call.1} parent=5 // pred_check
      _
    $region58: #{tpu_custom_call.1} parent=5 // pred_check_branch
      %356 = sbr.rel (%p353) target = $region60
    $region59: #{tpu_custom_call.1} parent=5 // pred_region
      %s357 = ssub.s32 %s18, 1
      %s358 = smul.u32 16, %s23
      %p359 = scmp.lt.s32.totalorder %s358, 31
      %s360 = scalar_select %p359, %s358, 31
      %s361 = smul.addr %s360, 8
      %s362 = scalar_lea.vmem %s0, %s361
      %p363 = pneg %p44
      %p364 = pneg %p41
      %s365 = smul.u32 16, %s23
      %p366 = scmp.lt.s32.totalorder %s365, 31
      %s367 = scalar_select %p366, %s365, 31
      %s368 = smul.addr %s367, 8
      %s369 = scalar_lea.vmem %s1, %s368
      %p370 = pneg %p70
      %p371 = pneg %p67
      %p372 = pneg %p91
      %p373 = pneg %p88
      %p374 = pneg %p112
      %p375 = pneg %p109
      %p376 = pneg %p133
      %p377 = pneg %p130
      %p378 = pneg %p154
      %p379 = pneg %p151
      %p380 = pneg %p175
      %p381 = pneg %p172
      %p382 = pneg %p196
      %p383 = pneg %p193
      %p384 = pneg %p217
      %p385 = pneg %p214
      %p386 = pneg %p238
      %p387 = pneg %p235
      %p388 = pneg %p264
      %p389 = pneg %p261
      %s390 = smul.u32 16, %s23
      %p391 = scmp.lt.s32.totalorder %s390, 31
      %s392 = scalar_select %p391, %s390, 31
      %s393 = smul.addr %s392, 8
      %s394 = scalar_lea.vmem %s10, %s393
      %p395 = pneg %p290
      %p396 = pneg %p287
      %s397 = smul.u32 16, %s23
      %p398 = scmp.lt.s32.totalorder %s397, 31
      %s399 = scalar_select %p398, %s397, 31
      %s400 = smul.addr %s399, 8
      %s401 = scalar_lea.vmem %s11, %s400
      %s402 = smul.u32 16, %s23
      %p403 = scmp.lt.s32.totalorder %s402, 31
      %s404 = scalar_select %p403, %s402, 31
      %s405 = smul.addr %s404, 8
      %s406 = scalar_lea.vmem %s0, %s405
      %s407 = smul.u32 16, %s23
      %s408 = smul.u32 16, %s23
      %p409 = scmp.lt.s32.totalorder %s408, 31
      %s410 = scalar_select %p409, %s408, 31
      %s411 = smul.addr %s410, 8
      %s412 = scalar_lea.vmem %s1, %s411
      %s413 = smul.u32 16, %s23
      %s414 = smul.u32 16, %s23
      %p415 = scmp.lt.s32.totalorder %s414, 31
      %s416 = scalar_select %p415, %s414, 31
      %s417 = smul.addr %s416, 8
      %s418 = scalar_lea.vmem %s10, %s417
      %s419 = smul.u32 16, %s23
      %s420 = smul.u32 16, %s23
      %p421 = scmp.lt.s32.totalorder %s420, 31
      %s422 = scalar_select %p421, %s420, 31
      %s423 = smul.addr %s422, 8
      %s424 = scalar_lea.vmem %s11, %s423
      %s425 = smul.u32 16, %s23
      %v427 = vld [vmem:[%s406] sm:$0xff]
      %v428 = vld [vmem:[%s406 + $0x8] sm:$0xff]
      %v429 = vld [vmem:[%s406 + $0x10] sm:$0xff]
      %v430 = vld [vmem:[%s406 + $0x18] sm:$0xff]
      %v431 = vld [vmem:[%s406 + $0x20] sm:$0xff]
      %v432 = vld [vmem:[%s406 + $0x28] sm:$0xff]
      %v433 = vld [vmem:[%s406 + $0x30] sm:$0xff]
      %v434 = vld [vmem:[%s406 + $0x38] sm:$0xff]
      %v435 = vld [vmem:[%s406 + $0x40] sm:$0xff]
      %v436 = vld [vmem:[%s406 + $0x48] sm:$0xff]
      %v437 = vld [vmem:[%s406 + $0x50] sm:$0xff]
      %v438 = vld [vmem:[%s406 + $0x58] sm:$0xff]
      %v439 = vld [vmem:[%s406 + $0x60] sm:$0xff]
      %v440 = vld [vmem:[%s406 + $0x68] sm:$0xff]
      %v441 = vld [vmem:[%s406 + $0x70] sm:$0xff]
      %v442 = vld [vmem:[%s406 + $0x78] sm:$0xff]
      %v443 = vld [vmem:[%s2] sm:$0xff]
      %v444 = vld [vmem:[%s2 + $0x8] sm:$0xff]
      %v445 = vld [vmem:[%s2 + $0x10] sm:$0xff]
      %v446 = vld [vmem:[%s2 + $0x18] sm:$0xff]
      %v447 = vld [vmem:[%s2 + $0x20] sm:$0xff]
      %v448 = vld [vmem:[%s2 + $0x28] sm:$0xff]
      %v449 = vld [vmem:[%s2 + $0x30] sm:$0xff]
      %v450 = vld [vmem:[%s2 + $0x38] sm:$0xff]
      %v451 = vld [vmem:[%s3] sm:$0x1]
      %v453 = vlaneseq
      %v454 = vshrl.u32 %v453, 7
      %v455 = vsub.s32 0, %v454
      %v456 = vrot.slane %v451, %v455
      %vm458 = vcmask 523264
      %v460 = vsel %vm458, %v427, 0
      %v463 = vsel %vm458, %v428, 0
      %v466 = vsel %vm458, %v429, 0
      %v469 = vsel %vm458, %v430, 0
      %v472 = vsel %vm458, %v431, 0
      %v475 = vsel %vm458, %v432, 0
      %v478 = vsel %vm458, %v433, 0
      %v481 = vsel %vm458, %v434, 0
      %v484 = vsel %vm458, %v435, 0
      %v487 = vsel %vm458, %v436, 0
      %v490 = vsel %vm458, %v437, 0
      %v493 = vsel %vm458, %v438, 0
      %v496 = vsel %vm458, %v439, 0
      %v499 = vsel %vm458, %v440, 0
      %v502 = vsel %vm458, %v441, 0
      %v505 = vsel %vm458, %v442, 0
      %507 = vmatprep.subr.mxu0 0.0
      %508 = vmatpush1.msra.mxu0 0.0
      %509 = vmatprep.subr.mxu0 0.0
      %510 = vmatpush1.msra.mxu0 0.0
      %511 = vmatprep.subr.mxu0 0.0
      %512 = vmatpush1.msra.mxu0 0.0
      %513 = vmatprep.subr.mxu0 0.0
      %514 = vmatpush1.msra.mxu0 0.0
      %515 = vmatprep.subr.mxu0 0.0
      %516 = vmatpush1.msra.mxu0 0.0
      %517 = vmatprep.subr.mxu0 0.0
      %518 = vmatpush1.msra.mxu0 0.0
      %519 = vmatprep.subr.mxu0 0.0
      %520 = vmatpush1.msra.mxu0 0.0
      %521 = vmatprep.subr.mxu0 0.0
      %522 = vmatpush1.msra.mxu0 0.0
      %523 = vmatprep.subr.mxu0 0.0
      %524 = vmatpush1.msra.mxu0 %v450
      %525 = vmatprep.subr.mxu0 0.0
      %526 = vmatpush1.msra.mxu0 %v449
      %527 = vmatprep.subr.mxu0 0.0
      %528 = vmatpush1.msra.mxu0 %v448
      %529 = vmatprep.subr.mxu0 0.0
      %530 = vmatpush1.msra.mxu0 %v447
      %531 = vmatprep.subr.mxu0 0.0
      %532 = vmatpush1.msra.mxu0 %v446
      %533 = vmatprep.subr.mxu0 0.0
      %534 = vmatpush1.msra.mxu0 %v445
      %535 = vmatprep.subr.mxu0 0.0
      %536 = vmatpush1.msra.mxu0 %v444
      %537 = vmatprep.subr.mxu0 0.0
      %538 = vmatpush1.msra.mxu0 %v443
      %539 = vmatprep.subr.mxu0 0.0
      %540 = vmatpush2.msra.mxu0 0.0
      %541 = vmatprep.subr.mxu0 0.0
      %542 = vmatpush2.msra.mxu0 0.0
      %543 = vmatprep.subr.mxu0 0.0
      %544 = vmatpush2.msra.mxu0 0.0
      %545 = vmatprep.subr.mxu0 0.0
      %546 = vmatpush2.msra.mxu0 0.0
      %547 = vmatprep.subr.mxu0 0.0
      %548 = vmatpush2.msra.mxu0 0.0
      %549 = vmatprep.subr.mxu0 0.0
      %550 = vmatpush2.msra.mxu0 0.0
      %551 = vmatprep.subr.mxu0 0.0
      %552 = vmatpush2.msra.mxu0 0.0
      %553 = vmatprep.subr.mxu0 0.0
      %554 = vmatpush2.msra.mxu0 0.0
      %555 = vmatprep.subr.mxu0 0.0
      %556 = vmatpush2.msra.mxu0 0.0
      %557 = vmatprep.subr.mxu0 0.0
      %558 = vmatpush2.msra.mxu0 0.0
      %559 = vmatprep.subr.mxu0 0.0
      %560 = vmatpush2.msra.mxu0 0.0
      %561 = vmatprep.subr.mxu0 0.0
      %562 = vmatpush2.msra.mxu0 0.0
      %563 = vmatprep.subr.mxu0 0.0
      %564 = vmatpush2.msra.mxu0 0.0
      %565 = vmatprep.subr.mxu0 0.0
      %566 = vmatpush2.msra.mxu0 0.0
      %567 = vmatprep.subr.mxu0 0.0
      %568 = vmatpush2.msra.mxu0 0.0
      %569 = vmatprep.subr.mxu0 0.0
      %570 = vmatpush2.msra.mxu0 0.0
      %571 = vmatprep.mubr.f32.mxu0 0.0
      %572 = vmatmul.mubr.f32.gmra.mxu0 %v460
      %v573 = vpop.f32.mrf.mxu0
      %v574 = vadd.f32 %v456, %v573
      %v575 = vpop.f32.mrf.mxu0
      %576 = vmatprep.mubr.f32.mxu0 0.0
      %577 = vmatmul.mubr.f32.gmra.mxu0 %v463
      %v578 = vpop.f32.mrf.mxu0
      %v579 = vadd.f32 %v456, %v578
      %v580 = vpop.f32.mrf.mxu0
      %581 = vmatprep.mubr.f32.mxu0 0.0
      %582 = vmatmul.mubr.f32.gmra.mxu0 %v466
      %v583 = vpop.f32.mrf.mxu0
      %v584 = vadd.f32 %v456, %v583
      %v585 = vpop.f32.mrf.mxu0
      %586 = vmatprep.mubr.f32.mxu0 0.0
      %587 = vmatmul.mubr.f32.gmra.mxu0 %v469
      %v588 = vpop.f32.mrf.mxu0
      %v589 = vadd.f32 %v456, %v588
      %v590 = vpop.f32.mrf.mxu0
      %591 = vmatprep.mubr.f32.mxu0 0.0
      %592 = vmatmul.mubr.f32.gmra.mxu0 %v472
      %v593 = vpop.f32.mrf.mxu0
      %v594 = vadd.f32 %v456, %v593
      %v595 = vpop.f32.mrf.mxu0
      %596 = vmatprep.mubr.f32.mxu0 0.0
      %597 = vmatmul.mubr.f32.gmra.mxu0 %v475
      %v598 = vpop.f32.mrf.mxu0
      %v599 = vadd.f32 %v456, %v598
      %v600 = vpop.f32.mrf.mxu0
      %601 = vmatprep.mubr.f32.mxu0 0.0
      %602 = vmatmul.mubr.f32.gmra.mxu0 %v478
      %v603 = vpop.f32.mrf.mxu0
      %v604 = vadd.f32 %v456, %v603
      %v605 = vpop.f32.mrf.mxu0
      %606 = vmatprep.mubr.f32.mxu0 0.0
      %607 = vmatmul.mubr.f32.gmra.mxu0 %v481
      %v608 = vpop.f32.mrf.mxu0
      %v609 = vadd.f32 %v456, %v608
      %v610 = vpop.f32.mrf.mxu0
      %611 = vmatprep.mubr.f32.mxu0 0.0
      %612 = vmatmul.mubr.f32.gmra.mxu0 %v484
      %v613 = vpop.f32.mrf.mxu0
      %v614 = vadd.f32 %v456, %v613
      %v615 = vpop.f32.mrf.mxu0
      %616 = vmatprep.mubr.f32.mxu0 0.0
      %617 = vmatmul.mubr.f32.gmra.mxu0 %v487
      %v618 = vpop.f32.mrf.mxu0
      %v619 = vadd.f32 %v456, %v618
      %v620 = vpop.f32.mrf.mxu0
      %621 = vmatprep.mubr.f32.mxu0 0.0
      %622 = vmatmul.mubr.f32.gmra.mxu0 %v490
      %v623 = vpop.f32.mrf.mxu0
      %v624 = vadd.f32 %v456, %v623
      %v625 = vpop.f32.mrf.mxu0
      %626 = vmatprep.mubr.f32.mxu0 0.0
      %627 = vmatmul.mubr.f32.gmra.mxu0 %v493
      %v628 = vpop.f32.mrf.mxu0
      %v629 = vadd.f32 %v456, %v628
      %v630 = vpop.f32.mrf.mxu0
      %631 = vmatprep.mubr.f32.mxu0 0.0
      %632 = vmatmul.mubr.f32.gmra.mxu0 %v496
      %v633 = vpop.f32.mrf.mxu0
      %v634 = vadd.f32 %v456, %v633
      %v635 = vpop.f32.mrf.mxu0
      %636 = vmatprep.mubr.f32.mxu0 0.0
      %637 = vmatmul.mubr.f32.gmra.mxu0 %v499
      %v638 = vpop.f32.mrf.mxu0
      %v639 = vadd.f32 %v456, %v638
      %v640 = vpop.f32.mrf.mxu0
      %641 = vmatprep.mubr.f32.mxu0 0.0
      %642 = vmatmul.mubr.f32.gmra.mxu0 %v502
      %v643 = vpop.f32.mrf.mxu0
      %v644 = vadd.f32 %v456, %v643
      %v645 = vpop.f32.mrf.mxu0
      %646 = vmatprep.mubr.f32.mxu0 0.0
      %647 = vmatmul.mubr.f32.gmra.mxu0 %v505
      %v648 = vpop.f32.mrf.mxu0
      %v649 = vadd.f32 %v456, %v648
      %v650 = vpop.f32.mrf.mxu0
      %651 = vdwg.mxu0
      %v652 = vmax.f32 %v574, 0.0
      %v653 = vmax.f32 %v579, 0.0
      %v654 = vmax.f32 %v584, 0.0
      %v655 = vmax.f32 %v589, 0.0
      %v656 = vmax.f32 %v594, 0.0
      %v657 = vmax.f32 %v599, 0.0
      %v658 = vmax.f32 %v604, 0.0
      %v659 = vmax.f32 %v609, 0.0
      %v660 = vmax.f32 %v614, 0.0
      %v661 = vmax.f32 %v619, 0.0
      %v662 = vmax.f32 %v624, 0.0
      %v663 = vmax.f32 %v629, 0.0
      %v664 = vmax.f32 %v634, 0.0
      %v665 = vmax.f32 %v639, 0.0
      %v666 = vmax.f32 %v644, 0.0
      %v667 = vmax.f32 %v649, 0.0
      %v668 = vld [vmem:[%s4] sm:$0xff]
      %v669 = vld [vmem:[%s4 + $0x8] sm:$0xff]
      %v670 = vld [vmem:[%s4 + $0x10] sm:$0xff]
      %v671 = vld [vmem:[%s4 + $0x18] sm:$0xff]
      %v672 = vld [vmem:[%s5] sm:$0x1]
      %v674 = vlaneseq
      %v675 = vshrl.u32 %v674, 7
      %v676 = vsub.s32 0, %v675
      %v677 = vrot.slane %v672, %v676
      %vm679 = vcmask 261120
      %v681 = vsel %vm679, %v652, 0
      %v684 = vsel %vm679, %v653, 0
      %v687 = vsel %vm679, %v654, 0
      %v690 = vsel %vm679, %v655, 0
      %v693 = vsel %vm679, %v656, 0
      %v696 = vsel %vm679, %v657, 0
      %v699 = vsel %vm679, %v658, 0
      %v702 = vsel %vm679, %v659, 0
      %v705 = vsel %vm679, %v660, 0
      %v708 = vsel %vm679, %v661, 0
      %v711 = vsel %vm679, %v662, 0
      %v714 = vsel %vm679, %v663, 0
      %v717 = vsel %vm679, %v664, 0
      %v720 = vsel %vm679, %v665, 0
      %v723 = vsel %vm679, %v666, 0
      %v726 = vsel %vm679, %v667, 0
      %728 = vmatprep.subr.mxu0 0.0
      %729 = vmatpush1.msra.mxu0 0.0
      %730 = vmatprep.subr.mxu0 0.0
      %731 = vmatpush1.msra.mxu0 0.0
      %732 = vmatprep.subr.mxu0 0.0
      %733 = vmatpush1.msra.mxu0 0.0
      %734 = vmatprep.subr.mxu0 0.0
      %735 = vmatpush1.msra.mxu0 0.0
      %736 = vmatprep.subr.mxu0 0.0
      %737 = vmatpush1.msra.mxu0 0.0
      %738 = vmatprep.subr.mxu0 0.0
      %739 = vmatpush1.msra.mxu0 0.0
      %740 = vmatprep.subr.mxu0 0.0
      %741 = vmatpush1.msra.mxu0 0.0
      %742 = vmatprep.subr.mxu0 0.0
      %743 = vmatpush1.msra.mxu0 0.0
      %744 = vmatprep.subr.mxu0 0.0
      %745 = vmatpush1.msra.mxu0 0.0
      %746 = vmatprep.subr.mxu0 0.0
      %747 = vmatpush1.msra.mxu0 0.0
      %748 = vmatprep.subr.mxu0 0.0
      %749 = vmatpush1.msra.mxu0 0.0
      %750 = vmatprep.subr.mxu0 0.0
      %751 = vmatpush1.msra.mxu0 0.0
      %752 = vmatprep.subr.mxu0 0.0
      %753 = vmatpush1.msra.mxu0 %v671
      %754 = vmatprep.subr.mxu0 0.0
      %755 = vmatpush1.msra.mxu0 %v670
      %756 = vmatprep.subr.mxu0 0.0
      %757 = vmatpush1.msra.mxu0 %v669
      %758 = vmatprep.subr.mxu0 0.0
      %759 = vmatpush1.msra.mxu0 %v668
      %760 = vmatprep.subr.mxu0 0.0
      %761 = vmatpush2.msra.mxu0 0.0
      %762 = vmatprep.subr.mxu0 0.0
      %763 = vmatpush2.msra.mxu0 0.0
      %764 = vmatprep.subr.mxu0 0.0
      %765 = vmatpush2.msra.mxu0 0.0
      %766 = vmatprep.subr.mxu0 0.0
      %767 = vmatpush2.msra.mxu0 0.0
      %768 = vmatprep.subr.mxu0 0.0
      %769 = vmatpush2.msra.mxu0 0.0
      %770 = vmatprep.subr.mxu0 0.0
      %771 = vmatpush2.msra.mxu0 0.0
      %772 = vmatprep.subr.mxu0 0.0
      %773 = vmatpush2.msra.mxu0 0.0
      %774 = vmatprep.subr.mxu0 0.0
      %775 = vmatpush2.msra.mxu0 0.0
      %776 = vmatprep.subr.mxu0 0.0
      %777 = vmatpush2.msra.mxu0 0.0
      %778 = vmatprep.subr.mxu0 0.0
      %779 = vmatpush2.msra.mxu0 0.0
      %780 = vmatprep.subr.mxu0 0.0
      %781 = vmatpush2.msra.mxu0 0.0
      %782 = vmatprep.subr.mxu0 0.0
      %783 = vmatpush2.msra.mxu0 0.0
      %784 = vmatprep.subr.mxu0 0.0
      %785 = vmatpush2.msra.mxu0 0.0
      %786 = vmatprep.subr.mxu0 0.0
      %787 = vmatpush2.msra.mxu0 0.0
      %788 = vmatprep.subr.mxu0 0.0
      %789 = vmatpush2.msra.mxu0 0.0
      %790 = vmatprep.subr.mxu0 0.0
      %791 = vmatpush2.msra.mxu0 0.0
      %792 = vmatprep.mubr.f32.mxu0 0.0
      %793 = vmatmul.mubr.f32.gmra.mxu0 %v681
      %v794 = vpop.f32.mrf.mxu0
      %v795 = vadd.f32 %v677, %v794
      %v796 = vpop.f32.mrf.mxu0
      %797 = vmatprep.mubr.f32.mxu0 0.0
      %798 = vmatmul.mubr.f32.gmra.mxu0 %v684
      %v799 = vpop.f32.mrf.mxu0
      %v800 = vadd.f32 %v677, %v799
      %v801 = vpop.f32.mrf.mxu0
      %802 = vmatprep.mubr.f32.mxu0 0.0
      %803 = vmatmul.mubr.f32.gmra.mxu0 %v687
      %v804 = vpop.f32.mrf.mxu0
      %v805 = vadd.f32 %v677, %v804
      %v806 = vpop.f32.mrf.mxu0
      %807 = vmatprep.mubr.f32.mxu0 0.0
      %808 = vmatmul.mubr.f32.gmra.mxu0 %v690
      %v809 = vpop.f32.mrf.mxu0
      %v810 = vadd.f32 %v677, %v809
      %v811 = vpop.f32.mrf.mxu0
      %812 = vmatprep.mubr.f32.mxu0 0.0
      %813 = vmatmul.mubr.f32.gmra.mxu0 %v693
      %v814 = vpop.f32.mrf.mxu0
      %v815 = vadd.f32 %v677, %v814
      %v816 = vpop.f32.mrf.mxu0
      %817 = vmatprep.mubr.f32.mxu0 0.0
      %818 = vmatmul.mubr.f32.gmra.mxu0 %v696
      %v819 = vpop.f32.mrf.mxu0
      %v820 = vadd.f32 %v677, %v819
      %v821 = vpop.f32.mrf.mxu0
      %822 = vmatprep.mubr.f32.mxu0 0.0
      %823 = vmatmul.mubr.f32.gmra.mxu0 %v699
      %v824 = vpop.f32.mrf.mxu0
      %v825 = vadd.f32 %v677, %v824
      %v826 = vpop.f32.mrf.mxu0
      %827 = vmatprep.mubr.f32.mxu0 0.0
      %828 = vmatmul.mubr.f32.gmra.mxu0 %v702
      %v829 = vpop.f32.mrf.mxu0
      %v830 = vadd.f32 %v677, %v829
      %v831 = vpop.f32.mrf.mxu0
      %832 = vmatprep.mubr.f32.mxu0 0.0
      %833 = vmatmul.mubr.f32.gmra.mxu0 %v705
      %v834 = vpop.f32.mrf.mxu0
      %v835 = vadd.f32 %v677, %v834
      %v836 = vpop.f32.mrf.mxu0
      %837 = vmatprep.mubr.f32.mxu0 0.0
      %838 = vmatmul.mubr.f32.gmra.mxu0 %v708
      %v839 = vpop.f32.mrf.mxu0
      %v840 = vadd.f32 %v677, %v839
      %v841 = vpop.f32.mrf.mxu0
      %842 = vmatprep.mubr.f32.mxu0 0.0
      %843 = vmatmul.mubr.f32.gmra.mxu0 %v711
      %v844 = vpop.f32.mrf.mxu0
      %v845 = vadd.f32 %v677, %v844
      %v846 = vpop.f32.mrf.mxu0
      %847 = vmatprep.mubr.f32.mxu0 0.0
      %848 = vmatmul.mubr.f32.gmra.mxu0 %v714
      %v849 = vpop.f32.mrf.mxu0
      %v850 = vadd.f32 %v677, %v849
      %v851 = vpop.f32.mrf.mxu0
      %852 = vmatprep.mubr.f32.mxu0 0.0
      %853 = vmatmul.mubr.f32.gmra.mxu0 %v717
      %v854 = vpop.f32.mrf.mxu0
      %v855 = vadd.f32 %v677, %v854
      %v856 = vpop.f32.mrf.mxu0
      %857 = vmatprep.mubr.f32.mxu0 0.0
      %858 = vmatmul.mubr.f32.gmra.mxu0 %v720
      %v859 = vpop.f32.mrf.mxu0
      %v860 = vadd.f32 %v677, %v859
      %v861 = vpop.f32.mrf.mxu0
      %862 = vmatprep.mubr.f32.mxu0 0.0
      %863 = vmatmul.mubr.f32.gmra.mxu0 %v723
      %v864 = vpop.f32.mrf.mxu0
      %v865 = vadd.f32 %v677, %v864
      %v866 = vpop.f32.mrf.mxu0
      %867 = vmatprep.mubr.f32.mxu0 0.0
      %868 = vmatmul.mubr.f32.gmra.mxu0 %v726
      %v869 = vpop.f32.mrf.mxu0
      %v870 = vadd.f32 %v677, %v869
      %v871 = vpop.f32.mrf.mxu0
      %872 = vdwg.mxu0
      %873 = vst.msk [vmem:[%s424] sm:$0xff] %vm679, %v795
      %874 = vst.msk [vmem:[%s424 + $0x8] sm:$0xff] %vm679, %v800
      %875 = vst.msk [vmem:[%s424 + $0x10] sm:$0xff] %vm679, %v805
      %876 = vst.msk [vmem:[%s424 + $0x18] sm:$0xff] %vm679, %v810
      %877 = vst.msk [vmem:[%s424 + $0x20] sm:$0xff] %vm679, %v815
      %878 = vst.msk [vmem:[%s424 + $0x28] sm:$0xff] %vm679, %v820
      %879 = vst.msk [vmem:[%s424 + $0x30] sm:$0xff] %vm679, %v825
      %880 = vst.msk [vmem:[%s424 + $0x38] sm:$0xff] %vm679, %v830
      %881 = vst.msk [vmem:[%s424 + $0x40] sm:$0xff] %vm679, %v835
      %882 = vst.msk [vmem:[%s424 + $0x48] sm:$0xff] %vm679, %v840
      %883 = vst.msk [vmem:[%s424 + $0x50] sm:$0xff] %vm679, %v845
      %884 = vst.msk [vmem:[%s424 + $0x58] sm:$0xff] %vm679, %v850
      %885 = vst.msk [vmem:[%s424 + $0x60] sm:$0xff] %vm679, %v855
      %886 = vst.msk [vmem:[%s424 + $0x68] sm:$0xff] %vm679, %v860
      %887 = vst.msk [vmem:[%s424 + $0x70] sm:$0xff] %vm679, %v865
      %888 = vst.msk [vmem:[%s424 + $0x78] sm:$0xff] %vm679, %v870
      %v889 = vlaneseq
      %v890 = vand.u32 %v889, 127
      %v891 = vmul.f32 %v795, 0.5
      %v892 = vmul.f32 %v800, 0.5
      %v893 = vmul.f32 %v805, 0.5
      %v894 = vmul.f32 %v810, 0.5
      %v895 = vmul.f32 %v815, 0.5
      %v896 = vmul.f32 %v820, 0.5
      %v897 = vmul.f32 %v825, 0.5
      %v898 = vmul.f32 %v830, 0.5
      %v899 = vmul.f32 %v835, 0.5
      %v900 = vmul.f32 %v840, 0.5
      %v901 = vmul.f32 %v845, 0.5
      %v902 = vmul.f32 %v850, 0.5
      %v903 = vmul.f32 %v855, 0.5
      %v904 = vmul.f32 %v860, 0.5
      %v905 = vmul.f32 %v865, 0.5
      %v906 = vmul.f32 %v870, 0.5
      %v907 = vmul.f32 %v891, 1.442695
      %v908 = vpow.pop %v907
      %v909 = vmul.f32 %v892, 1.442695
      %v910 = vpow.pop %v909
      %v911 = vmul.f32 %v893, 1.442695
      %v912 = vpow.pop %v911
      %v913 = vmul.f32 %v894, 1.442695
      %v914 = vpow.pop %v913
      %v915 = vmul.f32 %v895, 1.442695
      %v916 = vpow.pop %v915
      %v917 = vmul.f32 %v896, 1.442695
      %v918 = vpow.pop %v917
      %v919 = vmul.f32 %v897, 1.442695
      %v920 = vpow.pop %v919
      %v921 = vmul.f32 %v898, 1.442695
      %v922 = vpow.pop %v921
      %v923 = vmul.f32 %v899, 1.442695
      %v924 = vpow.pop %v923
      %v925 = vmul.f32 %v900, 1.442695
      %v926 = vpow.pop %v925
      %v927 = vmul.f32 %v901, 1.442695
      %v928 = vpow.pop %v927
      %v929 = vmul.f32 %v902, 1.442695
      %v930 = vpow.pop %v929
      %v931 = vmul.f32 %v903, 1.442695
      %v932 = vpow.pop %v931
      %v933 = vmul.f32 %v904, 1.442695
      %v934 = vpow.pop %v933
      %v935 = vmul.f32 %v905, 1.442695
      %v936 = vpow.pop %v935
      %v937 = vmul.f32 %v906, 1.442695
      %v938 = vpow.pop %v937
      %vm939 = vcmp.lt.s32.totalorder %v890, 16
      %v940 = vld [vmem:[%s412] sm:$0xff]
      %v941 = vld [vmem:[%s412 + $0x8] sm:$0xff]
      %v942 = vld [vmem:[%s412 + $0x10] sm:$0xff]
      %v943 = vld [vmem:[%s412 + $0x18] sm:$0xff]
      %v944 = vld [vmem:[%s412 + $0x20] sm:$0xff]
      %v945 = vld [vmem:[%s412 + $0x28] sm:$0xff]
      %v946 = vld [vmem:[%s412 + $0x30] sm:$0xff]
      %v947 = vld [vmem:[%s412 + $0x38] sm:$0xff]
      %v948 = vld [vmem:[%s412 + $0x40] sm:$0xff]
      %v949 = vld [vmem:[%s412 + $0x48] sm:$0xff]
      %v950 = vld [vmem:[%s412 + $0x50] sm:$0xff]
      %v951 = vld [vmem:[%s412 + $0x58] sm:$0xff]
      %v952 = vld [vmem:[%s412 + $0x60] sm:$0xff]
      %v953 = vld [vmem:[%s412 + $0x68] sm:$0xff]
      %v954 = vld [vmem:[%s412 + $0x70] sm:$0xff]
      %v955 = vld [vmem:[%s412 + $0x78] sm:$0xff]
      %v956 = vmul.f32 %v940, %v908
      %v957 = vmul.f32 %v941, %v910
      %v958 = vmul.f32 %v942, %v912
      %v959 = vmul.f32 %v943, %v914
      %v960 = vmul.f32 %v944, %v916
      %v961 = vmul.f32 %v945, %v918
      %v962 = vmul.f32 %v946, %v920
      %v963 = vmul.f32 %v947, %v922
      %v964 = vmul.f32 %v948, %v924
      %v965 = vmul.f32 %v949, %v926
      %v966 = vmul.f32 %v950, %v928
      %v967 = vmul.f32 %v951, %v930
      %v968 = vmul.f32 %v952, %v932
      %v969 = vmul.f32 %v953, %v934
      %v970 = vmul.f32 %v954, %v936
      %v971 = vmul.f32 %v955, %v938
      %v972 = vsel %vm939, %v795, %v956
      %v973 = vsel %vm939, %v800, %v957
      %v974 = vsel %vm939, %v805, %v958
      %v975 = vsel %vm939, %v810, %v959
      %v976 = vsel %vm939, %v815, %v960
      %v977 = vsel %vm939, %v820, %v961
      %v978 = vsel %vm939, %v825, %v962
      %v979 = vsel %vm939, %v830, %v963
      %v980 = vsel %vm939, %v835, %v964
      %v981 = vsel %vm939, %v840, %v965
      %v982 = vsel %vm939, %v845, %v966
      %v983 = vsel %vm939, %v850, %v967
      %v984 = vsel %vm939, %v855, %v968
      %v985 = vsel %vm939, %v860, %v969
      %v986 = vsel %vm939, %v865, %v970
      %v987 = vsel %vm939, %v870, %v971
      %v988 = vpack.c.bf16 %v973, %v972
      %v989 = vpack.c.bf16 %v975, %v974
      %v990 = vpack.c.bf16 %v977, %v976
      %v991 = vpack.c.bf16 %v979, %v978
      %v992 = vpack.c.bf16 %v981, %v980
      %v993 = vpack.c.bf16 %v983, %v982
      %v994 = vpack.c.bf16 %v985, %v984
      %v995 = vpack.c.bf16 %v987, %v986
      %v996 = vld [vmem:[%s6] sm:$0xf]
      %v997 = vld [vmem:[%s6 + $0x4] sm:$0xf]
      %v998 = vld [vmem:[%s6 + $0x8] sm:$0xf]
      %v999 = vld [vmem:[%s6 + $0xc] sm:$0xf]
      %v1000 = vld [vmem:[%s7] sm:$0x1]
      %v1002 = vlaneseq
      %v1003 = vshrl.u32 %v1002, 7
      %v1004 = vsub.s32 0, %v1003
      %v1005 = vrot.slane %v1000, %v1004
      %v1011 = vunpack.c.l.b16 %v996
      %v1012 = vunpack.c.l.b16 %v997
      %v1013 = vunpack.c.l.b16 %v998
      %v1014 = vunpack.c.l.b16 %v999
      %v1015 = vpack.c.b16 %v1012, %v1011
      %v1016 = vpack.c.b16 %v1014, %v1013
      %v1020 = vsel %vm679, %v988, 0
      %v1023 = vsel %vm679, %v989, 0
      %v1026 = vsel %vm679, %v990, 0
      %v1029 = vsel %vm679, %v991, 0
      %v1032 = vsel %vm679, %v992, 0
      %v1035 = vsel %vm679, %v993, 0
      %v1038 = vsel %vm679, %v994, 0
      %v1041 = vsel %vm679, %v995, 0
      %1043 = vmatprep.subr.bf16.mxu0 0
      %1044 = vmatpush1.bf16.msra.mxu0 0
      %1045 = vmatprep.subr.bf16.mxu0 0
      %1046 = vmatpush1.bf16.msra.mxu0 0
      %1047 = vmatprep.subr.bf16.mxu0 0
      %1048 = vmatpush1.bf16.msra.mxu0 0
      %1049 = vmatprep.subr.bf16.mxu0 0
      %1050 = vmatpush1.bf16.msra.mxu0 0
      %1051 = vmatprep.subr.bf16.mxu0 0
      %1052 = vmatpush1.bf16.msra.mxu0 0
      %1053 = vmatprep.subr.bf16.mxu0 0
      %1054 = vmatpush1.bf16.msra.mxu0 0
      %1055 = vmatprep.subr.bf16.mxu0 0
      %1056 = vmatpush1.bf16.msra.mxu0 %v1016
      %1057 = vmatprep.subr.bf16.mxu0 0
      %1058 = vmatpush1.bf16.msra.mxu0 %v1015
      %1059 = vmatprep.subr.bf16.mxu0 0
      %1060 = vmatpush2.bf16.msra.mxu0 0
      %1061 = vmatprep.subr.bf16.mxu0 0
      %1062 = vmatpush2.bf16.msra.mxu0 0
      %1063 = vmatprep.subr.bf16.mxu0 0
      %1064 = vmatpush2.bf16.msra.mxu0 0
      %1065 = vmatprep.subr.bf16.mxu0 0
      %1066 = vmatpush2.bf16.msra.mxu0 0
      %1067 = vmatprep.subr.bf16.mxu0 0
      %1068 = vmatpush2.bf16.msra.mxu0 0
      %1069 = vmatprep.subr.bf16.mxu0 0
      %1070 = vmatpush2.bf16.msra.mxu0 0
      %1071 = vmatprep.subr.bf16.mxu0 0
      %1072 = vmatpush2.bf16.msra.mxu0 0
      %1073 = vmatprep.subr.bf16.mxu0 0
      %1074 = vmatpush2.bf16.msra.mxu0 0
      %1075 = vmatprep.mubr.bf16.mxu0 0
      %1076 = vmatmul.mubr.bf16.gmra.mxu0 %v1020
      %v1077 = vpop.f32.mrf.mxu0
      %v1078 = vadd.f32 %v1005, %v1077
      %v1079 = vpop.f32.mrf.mxu0
      %v1080 = vpop.f32.mrf.mxu0
      %v1081 = vadd.f32 %v1005, %v1080
      %v1082 = vpop.f32.mrf.mxu0
      %1083 = vmatprep.mubr.bf16.mxu0 0
      %1084 = vmatmul.mubr.bf16.gmra.mxu0 %v1023
      %v1085 = vpop.f32.mrf.mxu0
      %v1086 = vadd.f32 %v1005, %v1085
      %v1087 = vpop.f32.mrf.mxu0
      %v1088 = vpop.f32.mrf.mxu0
      %v1089 = vadd.f32 %v1005, %v1088
      %v1090 = vpop.f32.mrf.mxu0
      %1091 = vmatprep.mubr.bf16.mxu0 0
      %1092 = vmatmul.mubr.bf16.gmra.mxu0 %v1026
      %v1093 = vpop.f32.mrf.mxu0
      %v1094 = vadd.f32 %v1005, %v1093
      %v1095 = vpop.f32.mrf.mxu0
      %v1096 = vpop.f32.mrf.mxu0
      %v1097 = vadd.f32 %v1005, %v1096
      %v1098 = vpop.f32.mrf.mxu0
      %1099 = vmatprep.mubr.bf16.mxu0 0
      %1100 = vmatmul.mubr.bf16.gmra.mxu0 %v1029
      %v1101 = vpop.f32.mrf.mxu0
      %v1102 = vadd.f32 %v1005, %v1101
      %v1103 = vpop.f32.mrf.mxu0
      %v1104 = vpop.f32.mrf.mxu0
      %v1105 = vadd.f32 %v1005, %v1104
      %v1106 = vpop.f32.mrf.mxu0
      %1107 = vmatprep.mubr.bf16.mxu0 0
      %1108 = vmatmul.mubr.bf16.gmra.mxu0 %v1032
      %v1109 = vpop.f32.mrf.mxu0
      %v1110 = vadd.f32 %v1005, %v1109
      %v1111 = vpop.f32.mrf.mxu0
      %v1112 = vpop.f32.mrf.mxu0
      %v1113 = vadd.f32 %v1005, %v1112
      %v1114 = vpop.f32.mrf.mxu0
      %1115 = vmatprep.mubr.bf16.mxu0 0
      %1116 = vmatmul.mubr.bf16.gmra.mxu0 %v1035
      %v1117 = vpop.f32.mrf.mxu0
      %v1118 = vadd.f32 %v1005, %v1117
      %v1119 = vpop.f32.mrf.mxu0
      %v1120 = vpop.f32.mrf.mxu0
      %v1121 = vadd.f32 %v1005, %v1120
      %v1122 = vpop.f32.mrf.mxu0
      %1123 = vmatprep.mubr.bf16.mxu0 0
      %1124 = vmatmul.mubr.bf16.gmra.mxu0 %v1038
      %v1125 = vpop.f32.mrf.mxu0
      %v1126 = vadd.f32 %v1005, %v1125
      %v1127 = vpop.f32.mrf.mxu0
      %v1128 = vpop.f32.mrf.mxu0
      %v1129 = vadd.f32 %v1005, %v1128
      %v1130 = vpop.f32.mrf.mxu0
      %1131 = vmatprep.mubr.bf16.mxu0 0
      %1132 = vmatmul.mubr.bf16.gmra.mxu0 %v1041
      %v1133 = vpop.f32.mrf.mxu0
      %v1134 = vadd.f32 %v1005, %v1133
      %v1135 = vpop.f32.mrf.mxu0
      %v1136 = vpop.f32.mrf.mxu0
      %v1137 = vadd.f32 %v1005, %v1136
      %v1138 = vpop.f32.mrf.mxu0
      %1139 = vdwg.mxu0
      %v1140 = vmax.f32 %v1078, 0.0
      %v1141 = vmax.f32 %v1081, 0.0
      %v1142 = vmax.f32 %v1086, 0.0
      %v1143 = vmax.f32 %v1089, 0.0
      %v1144 = vmax.f32 %v1094, 0.0
      %v1145 = vmax.f32 %v1097, 0.0
      %v1146 = vmax.f32 %v1102, 0.0
      %v1147 = vmax.f32 %v1105, 0.0
      %v1148 = vmax.f32 %v1110, 0.0
      %v1149 = vmax.f32 %v1113, 0.0
      %v1150 = vmax.f32 %v1118, 0.0
      %v1151 = vmax.f32 %v1121, 0.0
      %v1152 = vmax.f32 %v1126, 0.0
      %v1153 = vmax.f32 %v1129, 0.0
      %v1154 = vmax.f32 %v1134, 0.0
      %v1155 = vmax.f32 %v1137, 0.0
      %v1156 = vpack.c.bf16 %v1141, %v1140
      %v1157 = vpack.c.bf16 %v1143, %v1142
      %v1158 = vpack.c.bf16 %v1145, %v1144
      %v1159 = vpack.c.bf16 %v1147, %v1146
      %v1160 = vpack.c.bf16 %v1149, %v1148
      %v1161 = vpack.c.bf16 %v1151, %v1150
      %v1162 = vpack.c.bf16 %v1153, %v1152
      %v1163 = vpack.c.bf16 %v1155, %v1154
      %v1164 = vld [vmem:[%s8] sm:$0xf]
      %v1165 = vld [vmem:[%s8 + $0x4] sm:$0xf]
      %v1166 = vld [vmem:[%s8 + $0x8] sm:$0xf]
      %v1167 = vld [vmem:[%s8 + $0xc] sm:$0xf]
      %v1168 = vld [vmem:[%s9] sm:$0x1]
      %v1170 = vlaneseq
      %v1171 = vshrl.u32 %v1170, 7
      %v1172 = vsub.s32 0, %v1171
      %v1173 = vrot.slane %v1168, %v1172
      %v1179 = vunpack.c.l.b16 %v1164
      %v1180 = vunpack.c.l.b16 %v1165
      %v1181 = vunpack.c.l.b16 %v1166
      %v1182 = vunpack.c.l.b16 %v1167
      %v1183 = vpack.c.b16 %v1180, %v1179
      %v1184 = vpack.c.b16 %v1182, %v1181
      %v1188 = vsel %vm679, %v1156, 0
      %v1191 = vsel %vm679, %v1157, 0
      %v1194 = vsel %vm679, %v1158, 0
      %v1197 = vsel %vm679, %v1159, 0
      %v1200 = vsel %vm679, %v1160, 0
      %v1203 = vsel %vm679, %v1161, 0
      %v1206 = vsel %vm679, %v1162, 0
      %v1209 = vsel %vm679, %v1163, 0
      %1211 = vmatprep.subr.bf16.mxu0 0
      %1212 = vmatpush1.bf16.msra.mxu0 0
      %1213 = vmatprep.subr.bf16.mxu0 0
      %1214 = vmatpush1.bf16.msra.mxu0 0
      %1215 = vmatprep.subr.bf16.mxu0 0
      %1216 = vmatpush1.bf16.msra.mxu0 0
      %1217 = vmatprep.subr.bf16.mxu0 0
      %1218 = vmatpush1.bf16.msra.mxu0 0
      %1219 = vmatprep.subr.bf16.mxu0 0
      %1220 = vmatpush1.bf16.msra.mxu0 0
      %1221 = vmatprep.subr.bf16.mxu0 0
      %1222 = vmatpush1.bf16.msra.mxu0 0
      %1223 = vmatprep.subr.bf16.mxu0 0
      %1224 = vmatpush1.bf16.msra.mxu0 %v1184
      %1225 = vmatprep.subr.bf16.mxu0 0
      %1226 = vmatpush1.bf16.msra.mxu0 %v1183
      %1227 = vmatprep.subr.bf16.mxu0 0
      %1228 = vmatpush2.bf16.msra.mxu0 0
      %1229 = vmatprep.subr.bf16.mxu0 0
      %1230 = vmatpush2.bf16.msra.mxu0 0
      %1231 = vmatprep.subr.bf16.mxu0 0
      %1232 = vmatpush2.bf16.msra.mxu0 0
      %1233 = vmatprep.subr.bf16.mxu0 0
      %1234 = vmatpush2.bf16.msra.mxu0 0
      %1235 = vmatprep.subr.bf16.mxu0 0
      %1236 = vmatpush2.bf16.msra.mxu0 0
      %1237 = vmatprep.subr.bf16.mxu0 0
      %1238 = vmatpush2.bf16.msra.mxu0 0
      %1239 = vmatprep.subr.bf16.mxu0 0
      %1240 = vmatpush2.bf16.msra.mxu0 0
      %1241 = vmatprep.subr.bf16.mxu0 0
      %1242 = vmatpush2.bf16.msra.mxu0 0
      %1243 = vmatprep.mubr.bf16.mxu0 0
      %1244 = vmatmul.mubr.bf16.gmra.mxu0 %v1188
      %v1245 = vpop.f32.mrf.mxu0
      %v1246 = vadd.f32 %v1173, %v1245
      %v1247 = vpop.f32.mrf.mxu0
      %v1248 = vpop.f32.mrf.mxu0
      %v1249 = vadd.f32 %v1173, %v1248
      %v1250 = vpop.f32.mrf.mxu0
      %1251 = vmatprep.mubr.bf16.mxu0 0
      %1252 = vmatmul.mubr.bf16.gmra.mxu0 %v1191
      %v1253 = vpop.f32.mrf.mxu0
      %v1254 = vadd.f32 %v1173, %v1253
      %v1255 = vpop.f32.mrf.mxu0
      %v1256 = vpop.f32.mrf.mxu0
      %v1257 = vadd.f32 %v1173, %v1256
      %v1258 = vpop.f32.mrf.mxu0
      %1259 = vmatprep.mubr.bf16.mxu0 0
      %1260 = vmatmul.mubr.bf16.gmra.mxu0 %v1194
      %v1261 = vpop.f32.mrf.mxu0
      %v1262 = vadd.f32 %v1173, %v1261
      %v1263 = vpop.f32.mrf.mxu0
      %v1264 = vpop.f32.mrf.mxu0
      %v1265 = vadd.f32 %v1173, %v1264
      %v1266 = vpop.f32.mrf.mxu0
      %1267 = vmatprep.mubr.bf16.mxu0 0
      %1268 = vmatmul.mubr.bf16.gmra.mxu0 %v1197
      %v1269 = vpop.f32.mrf.mxu0
      %v1270 = vadd.f32 %v1173, %v1269
      %v1271 = vpop.f32.mrf.mxu0
      %v1272 = vpop.f32.mrf.mxu0
      %v1273 = vadd.f32 %v1173, %v1272
      %v1274 = vpop.f32.mrf.mxu0
      %1275 = vmatprep.mubr.bf16.mxu0 0
      %1276 = vmatmul.mubr.bf16.gmra.mxu0 %v1200
      %v1277 = vpop.f32.mrf.mxu0
      %v1278 = vadd.f32 %v1173, %v1277
      %v1279 = vpop.f32.mrf.mxu0
      %v1280 = vpop.f32.mrf.mxu0
      %v1281 = vadd.f32 %v1173, %v1280
      %v1282 = vpop.f32.mrf.mxu0
      %1283 = vmatprep.mubr.bf16.mxu0 0
      %1284 = vmatmul.mubr.bf16.gmra.mxu0 %v1203
      %v1285 = vpop.f32.mrf.mxu0
      %v1286 = vadd.f32 %v1173, %v1285
      %v1287 = vpop.f32.mrf.mxu0
      %v1288 = vpop.f32.mrf.mxu0
      %v1289 = vadd.f32 %v1173, %v1288
      %v1290 = vpop.f32.mrf.mxu0
      %1291 = vmatprep.mubr.bf16.mxu0 0
      %1292 = vmatmul.mubr.bf16.gmra.mxu0 %v1206
      %v1293 = vpop.f32.mrf.mxu0
      %v1294 = vadd.f32 %v1173, %v1293
      %v1295 = vpop.f32.mrf.mxu0
      %v1296 = vpop.f32.mrf.mxu0
      %v1297 = vadd.f32 %v1173, %v1296
      %v1298 = vpop.f32.mrf.mxu0
      %1299 = vmatprep.mubr.bf16.mxu0 0
      %1300 = vmatmul.mubr.bf16.gmra.mxu0 %v1209
      %v1301 = vpop.f32.mrf.mxu0
      %v1302 = vadd.f32 %v1173, %v1301
      %v1303 = vpop.f32.mrf.mxu0
      %v1304 = vpop.f32.mrf.mxu0
      %v1305 = vadd.f32 %v1173, %v1304
      %v1306 = vpop.f32.mrf.mxu0
      %1307 = vdwg.mxu0
      %v1308 = vsub.f32 0.0, %v1246
      %v1309 = vsub.f32 0.0, %v1249
      %v1310 = vsub.f32 0.0, %v1254
      %v1311 = vsub.f32 0.0, %v1257
      %v1312 = vsub.f32 0.0, %v1262
      %v1313 = vsub.f32 0.0, %v1265
      %v1314 = vsub.f32 0.0, %v1270
      %v1315 = vsub.f32 0.0, %v1273
      %v1316 = vsub.f32 0.0, %v1278
      %v1317 = vsub.f32 0.0, %v1281
      %v1318 = vsub.f32 0.0, %v1286
      %v1319 = vsub.f32 0.0, %v1289
      %v1320 = vsub.f32 0.0, %v1294
      %v1321 = vsub.f32 0.0, %v1297
      %v1322 = vsub.f32 0.0, %v1302
      %v1323 = vsub.f32 0.0, %v1305
      %v1324 = vmul.f32 %v1308, 1.442695
      %v1325 = vpow.pop %v1324
      %v1326 = vmul.f32 %v1309, 1.442695
      %v1327 = vpow.pop %v1326
      %v1328 = vmul.f32 %v1310, 1.442695
      %v1329 = vpow.pop %v1328
      %v1330 = vmul.f32 %v1311, 1.442695
      %v1331 = vpow.pop %v1330
      %v1332 = vmul.f32 %v1312, 1.442695
      %v1333 = vpow.pop %v1332
      %v1334 = vmul.f32 %v1313, 1.442695
      %v1335 = vpow.pop %v1334
      %v1336 = vmul.f32 %v1314, 1.442695
      %v1337 = vpow.pop %v1336
      %v1338 = vmul.f32 %v1315, 1.442695
      %v1339 = vpow.pop %v1338
      %v1340 = vmul.f32 %v1316, 1.442695
      %v1341 = vpow.pop %v1340
      %v1342 = vmul.f32 %v1317, 1.442695
      %v1343 = vpow.pop %v1342
      %v1344 = vmul.f32 %v1318, 1.442695
      %v1345 = vpow.pop %v1344
      %v1346 = vmul.f32 %v1319, 1.442695
      %v1347 = vpow.pop %v1346
      %v1348 = vmul.f32 %v1320, 1.442695
      %v1349 = vpow.pop %v1348
      %v1350 = vmul.f32 %v1321, 1.442695
      %v1351 = vpow.pop %v1350
      %v1352 = vmul.f32 %v1322, 1.442695
      %v1353 = vpow.pop %v1352
      %v1354 = vmul.f32 %v1323, 1.442695
      %v1355 = vpow.pop %v1354
      %v1356 = vadd.f32 %v1325, 1.0
      %v1357 = vadd.f32 %v1327, 1.0
      %v1358 = vadd.f32 %v1329, 1.0
      %v1359 = vadd.f32 %v1331, 1.0
      %v1360 = vadd.f32 %v1333, 1.0
      %v1361 = vadd.f32 %v1335, 1.0
      %v1362 = vadd.f32 %v1337, 1.0
      %v1363 = vadd.f32 %v1339, 1.0
      %v1364 = vadd.f32 %v1341, 1.0
      %v1365 = vadd.f32 %v1343, 1.0
      %v1366 = vadd.f32 %v1345, 1.0
      %v1367 = vadd.f32 %v1347, 1.0
      %v1368 = vadd.f32 %v1349, 1.0
      %v1369 = vadd.f32 %v1351, 1.0
      %v1370 = vadd.f32 %v1353, 1.0
      %v1371 = vadd.f32 %v1355, 1.0
      %v1372 = vrcp.pop %v1356
      %v1373 = vrcp.pop %v1357
      %v1374 = vrcp.pop %v1358
      %v1375 = vrcp.pop %v1359
      %v1376 = vrcp.pop %v1360
      %v1377 = vrcp.pop %v1361
      %v1378 = vrcp.pop %v1362
      %v1379 = vrcp.pop %v1363
      %v1380 = vrcp.pop %v1364
      %v1381 = vrcp.pop %v1365
      %v1382 = vrcp.pop %v1366
      %v1383 = vrcp.pop %v1367
      %v1384 = vrcp.pop %v1368
      %v1385 = vrcp.pop %v1369
      %v1386 = vrcp.pop %v1370
      %v1387 = vrcp.pop %v1371
      %1388 = vst.msk [vmem:[%s418] sm:$0xff] %vm458, %v1372
      %1389 = vst.msk [vmem:[%s418 + $0x8] sm:$0xff] %vm458, %v1373
      %1390 = vst.msk [vmem:[%s418 + $0x10] sm:$0xff] %vm458, %v1374
      %1391 = vst.msk [vmem:[%s418 + $0x18] sm:$0xff] %vm458, %v1375
      %1392 = vst.msk [vmem:[%s418 + $0x20] sm:$0xff] %vm458, %v1376
      %1393 = vst.msk [vmem:[%s418 + $0x28] sm:$0xff] %vm458, %v1377
      %1394 = vst.msk [vmem:[%s418 + $0x30] sm:$0xff] %vm458, %v1378
      %1395 = vst.msk [vmem:[%s418 + $0x38] sm:$0xff] %vm458, %v1379
      %1396 = vst.msk [vmem:[%s418 + $0x40] sm:$0xff] %vm458, %v1380
      %1397 = vst.msk [vmem:[%s418 + $0x48] sm:$0xff] %vm458, %v1381
      %1398 = vst.msk [vmem:[%s418 + $0x50] sm:$0xff] %vm458, %v1382
      %1399 = vst.msk [vmem:[%s418 + $0x58] sm:$0xff] %vm458, %v1383
      %1400 = vst.msk [vmem:[%s418 + $0x60] sm:$0xff] %vm458, %v1384
      %1401 = vst.msk [vmem:[%s418 + $0x68] sm:$0xff] %vm458, %v1385
      %1402 = vst.msk [vmem:[%s418 + $0x70] sm:$0xff] %vm458, %v1386
      %1403 = vst.msk [vmem:[%s418 + $0x78] sm:$0xff] %vm458, %v1387
      %s1404 = smul.u32 16, %s23
      %p1405 = scmp.lt.s32.totalorder %s1404, 31
      %s1406 = scalar_select %p1405, %s1404, 31
      %s1407 = smul.addr %s1406, 8
      %s1408 = scalar_lea.vmem %s10, %s1407
      %s1409 = smul.u32 16, %s23
      %p1410 = scmp.lt.s32.totalorder %s1409, 31
      %s1411 = scalar_select %p1410, %s1409, 31
      %s1412 = smul.addr %s1411, 8
      %s1413 = scalar_lea.vmem %s11, %s1412
      // Predicated region
      $region61: #{tpu_custom_call.1} parent=59 // pred_check
        %p1414 = pneg %p261
      $region62: #{tpu_custom_call.1} parent=59 // pred_check_branch
        %1416 = sbr.rel (%p1414) target = $region64
      $region63: #{tpu_custom_call.1} parent=59 // pred_region
        %s1417 = smul.u32 16, %s23
      $region64: #{tpu_custom_call.1} parent=59 // pred_fallthru
        _
      // Predicated region
      $region65: #{tpu_custom_call.1} parent=59 // pred_check
        %p1418 = pneg %p287
      $region66: #{tpu_custom_call.1} parent=59 // pred_check_branch
        %1420 = sbr.rel (%p1418) target = $region68
      $region67: #{tpu_custom_call.1} parent=59 // pred_region
        %s1421 = smul.u32 16, %s23
      $region68: #{tpu_custom_call.1} parent=59 // pred_fallthru
        _
    $region60: #{tpu_custom_call.1} parent=5 // pred_fallthru
      _
    %p1422 = scmp.le.s32.totalorder 2, %s18
    // Predicated region
    $region69: #{tpu_custom_call.1} parent=5 // pred_check
      %p1423 = pneg %p1422
    $region70: #{tpu_custom_call.1} parent=5 // pred_check_branch
      %1425 = sbr.rel (%p1423) target = $region72
    $region71: #{tpu_custom_call.1} parent=5 // pred_region
      %s1426 = ssub.s32 %s18, 2
      // Predicated region
      $region73: #{tpu_custom_call.1} parent=71 // pred_check
        %p1427 = pneg %p267
      $region74: #{tpu_custom_call.1} parent=71 // pred_check_branch
        %1429 = sbr.rel (%p1427) target = $region76
      $region75: #{tpu_custom_call.1} parent=71 // pred_region
        %s1430 = smul.u32 16, %s24
        %p1431 = scmp.lt.s32.totalorder %s1430, 31
        %s1432 = scalar_select %p1431, %s1430, 31
        %s1433 = smul.addr %s1432, 8
        %s1434 = scalar_lea.vmem %s10, %s1433
      $region76: #{tpu_custom_call.1} parent=71 // pred_fallthru
        _
      // Predicated region
      $region77: #{tpu_custom_call.1} parent=71 // pred_check
        %p1435 = pneg %p293
      $region78: #{tpu_custom_call.1} parent=71 // pred_check_branch
        %1437 = sbr.rel (%p1435) target = $region80
      $region79: #{tpu_custom_call.1} parent=71 // pred_region
        %s1438 = smul.u32 16, %s24
        %p1439 = scmp.lt.s32.totalorder %s1438, 31
        %s1440 = scalar_select %p1439, %s1438, 31
        %s1441 = smul.addr %s1440, 8
        %s1442 = scalar_lea.vmem %s11, %s1441
      $region80: #{tpu_custom_call.1} parent=71 // pred_fallthru
        _
    $region72: #{tpu_custom_call.1} parent=5 // pred_fallthru
      _
  $region6: #{tpu_custom_call.1} parent=0 // loop_footer
    %s22 = sadd.s32 1, %s18
  $region7: #{tpu_custom_call.1} parent=0 // loop_footer_branch
    %17 = sbr.rel target = $region3
  $region8: #{tpu_custom_call.1} parent=0 // loop_exit
    _

</llo_original>
